<compile_context>
chip_gen: v5e
topology: v5e:2x2
jax: 0.10.0
libtpu: 0.0.40
codegen_flags: <defaults>
</compile_context>

<pallas_src>
import jax
import jax.numpy as jnp
from jax.experimental import pallas as pl
from jax.experimental.pallas import tpu as pltpu


# ------------------------------ Pallas kernel ------------------------------

def _ffn_kernel(x_ref, w1_ref, b1_ref, w2_ref, b2_ref, o_ref):
    # In-kernel cast to bf16 (VPU op, hidden under the matmul) instead of a
    # separate wrapper-side conversion pass over HBM.
    x = x_ref[...].astype(jnp.bfloat16)                                # (TM, D)
    h = jnp.dot(x, w1_ref[...], preferred_element_type=jnp.float32)    # (TM, H) f32 acc
    h = h + b1_ref[...]                                                # bias in f32
    # tanh-approximate GELU: the transcendental goes to the EUP slot (free vs
    # the VALU-heavy erf polynomial).  Max deviation from exact erf-GELU is
    # ~5e-4, far under the bf16 noise floor.
    h = 0.5 * h * (1.0 + jnp.tanh(0.7978845608028654 * (h + 0.044715 * (h * h * h))))
    # TODO(synk): nn.Dropout layers are identity here (eval / inference mode).
    h = h.astype(w2_ref.dtype)                                         # bf16 for MXU
    y = jnp.dot(h, w2_ref[...], preferred_element_type=jnp.float32)    # (TM, D) f32 acc
    y = y + b2_ref[...]
    o_ref[...] = y.astype(o_ref.dtype)


# --------------------------------- wrapper ----------------------------------

def _round_up(a, b):
    return ((a + b - 1) // b) * b


def feed_forward(x, w1, b1, w2, b2, *, block_rows=512):
    """Fused FFN.  x: (..., dim); w1: (dim, hidden) bf16; w2: (hidden, dim) bf16;
    b1/b2: f32.  Returns same shape / dtype as x."""
    orig_shape = x.shape
    D = orig_shape[-1]
    H = w1.shape[1]
    out_dtype = x.dtype

    xm = x.reshape(-1, D)
    M = xm.shape[0]

    # Row tile: multiple of 8 sublanes, capped at block_rows, and small enough
    # that the row grid has >= 2 steps (feeds both v7x TensorCores).  No
    # padding: the final partial tile is masked by Pallas boundary handling.
    TM = max(8, min(block_rows, _round_up(pl.cdiv(M, 2), 8)))
    grid = (pl.cdiv(M, TM),)

    itemsize = lambda a: a.dtype.itemsize
    cost = pl.CostEstimate(
        flops=4 * M * D * H,                      # two (M,D,H)-sized matmuls
        transcendentals=M * H,                    # one tanh per hidden activation
        bytes_accessed=(M * D * itemsize(xm) + D * H * itemsize(w1)
                        + H * D * itemsize(w2) + H * itemsize(b1)
                        + D * itemsize(b2) + M * D * jnp.dtype(out_dtype).itemsize),
    )

    out = pl.pallas_call(
        _ffn_kernel,
        out_shape=jax.ShapeDtypeStruct((M, D), out_dtype),
        grid=grid,
        in_specs=[
            pl.BlockSpec((TM, D), lambda i: (i, 0)),   # x row tile (input dtype)
            pl.BlockSpec((D, H), lambda i: (0, 0)),    # W1 (VMEM-resident)
            pl.BlockSpec((1, H), lambda i: (0, 0)),    # b1 (resident)
            pl.BlockSpec((H, D), lambda i: (0, 0)),    # W2 (resident)
            pl.BlockSpec((1, D), lambda i: (0, 0)),    # b2 (resident)
        ],
        out_specs=pl.BlockSpec((TM, D), lambda i: (i, 0)),
        compiler_params=pltpu.CompilerParams(
            dimension_semantics=("parallel",)),
        cost_estimate=cost,
    )(xm, w1, b1.reshape(1, H), w2, b2.reshape(1, D))

    return out.reshape(orig_shape)


# --------------------------------- driver ----------------------------------

if __name__ == "__main__":
    key = jax.random.PRNGKey(0)
    k1, k2, k3, k4, k5 = jax.random.split(key, 5)

    B, S, DIM, HID = 2, 256, 128, 512          # dim/hidden multiples of 128
    dropout_rate = 0.1                          # identity in eval mode

    x = jax.random.normal(k1, (B, S, DIM), jnp.float32)
    w1 = (jax.random.normal(k2, (DIM, HID), jnp.float32)
          / jnp.sqrt(DIM)).astype(jnp.bfloat16)
    b1 = 0.01 * jax.random.normal(k3, (HID,), jnp.float32)
    w2 = (jax.random.normal(k4, (HID, DIM), jnp.float32)
          / jnp.sqrt(HID)).astype(jnp.bfloat16)
    b2 = 0.01 * jax.random.normal(k5, (DIM,), jnp.float32)

    y = jax.block_until_ready(jax.jit(feed_forward)(x, w1, b1, w2, b2))

    # Pure-JAX reference with identical dtype handling (bf16 operands on the
    # MXU, f32 accumulation) and the exact erf-based GELU of F.gelu's default.
    xb = x.reshape(-1, DIM).astype(jnp.bfloat16)
    h_ref = jnp.dot(xb, w1, preferred_element_type=jnp.float32) + b1
    h_ref = jax.nn.gelu(h_ref, approximate=False).astype(jnp.bfloat16)
    ref = jnp.dot(h_ref, w2, preferred_element_type=jnp.float32) + b2
    ref = ref.reshape(B, S, DIM).astype(jnp.float32)

    assert y.shape == (B, S, DIM), y.shape
    assert bool(jnp.all(jnp.isfinite(y)))
    max_err = float(jnp.max(jnp.abs(y.astype(jnp.float32) - ref)))
    assert max_err < 3e-2, f"max abs err {max_err}"
    print("KERNEL_OK")
</pallas_src>

<mosaic_0001>
module attributes {stable_mosaic.version = 11 : i64} {
  func.func @_ffn_kernel(%arg0: i32, %arg1: memref<256x128xf32, #tpu.memory_space<vmem>>, %arg2: memref<128x512xbf16, #tpu.memory_space<vmem>>, %arg3: memref<1x512xf32, #tpu.memory_space<vmem>>, %arg4: memref<512x128xbf16, #tpu.memory_space<vmem>>, %arg5: memref<1x128xf32, #tpu.memory_space<vmem>>, %arg6: memref<256x128xf32, #tpu.memory_space<vmem>>) attributes {dimension_semantics = [#tpu.dimension_semantics<parallel>], iteration_bounds = array<i64: 2>, scalar_prefetch = 0 : i64, scratch_operands = 0 : i64, tpu.core_type = #tpu.core_type<tc>, window_params = [{transform_indices = @transform_0, window_bounds = array<i64: 256, 128>}, {pipeline_mode = #tpu.pipeline_mode<synchronous>, transform_indices = @transform_1, window_bounds = array<i64: 128, 512>}, {pipeline_mode = #tpu.pipeline_mode<synchronous>, transform_indices = @transform_2, window_bounds = array<i64: 1, 512>}, {pipeline_mode = #tpu.pipeline_mode<synchronous>, transform_indices = @transform_3, window_bounds = array<i64: 512, 128>}, {pipeline_mode = #tpu.pipeline_mode<synchronous>, transform_indices = @transform_4, window_bounds = array<i64: 1, 128>}, {transform_indices = @transform_5, window_bounds = array<i64: 256, 128>}]} {
    %c0 = arith.constant 0 : index
    %c0_0 = arith.constant 0 : index
    %0 = vector.load %arg1[%c0, %c0_0] : memref<256x128xf32, #tpu.memory_space<vmem>>, vector<256x128xf32>
    %1 = arith.truncf %0 : vector<256x128xf32> to vector<256x128xbf16>
    %c0_1 = arith.constant 0 : index
    %c0_2 = arith.constant 0 : index
    %2 = vector.load %arg2[%c0_1, %c0_2] : memref<128x512xbf16, #tpu.memory_space<vmem>>, vector<128x512xbf16>
    %cst = arith.constant dense<0.000000e+00> : vector<256x512xf32>
    %3 = tpu.matmul %1, %2, %cst {dimension_numbers = #tpu.dot_dimension_numbers<[1], [0], [0], [1], [0, 0, 1, 1], [], []>} : vector<256x128xbf16>, vector<128x512xbf16>, vector<256x512xf32> -> vector<256x512xf32>
    %c0_3 = arith.constant 0 : index
    %c0_4 = arith.constant 0 : index
    %4 = vector.load %arg3[%c0_3, %c0_4] : memref<1x512xf32, #tpu.memory_space<vmem>>, vector<1x512xf32>
    %5 = vector.broadcast %4 : vector<1x512xf32> to vector<256x512xf32>
    %6 = arith.addf %3, %5 : vector<256x512xf32>
    %cst_5 = arith.constant 5.000000e-01 : f32
    %7 = vector.broadcast %cst_5 : f32 to vector<256x512xf32>
    %8 = arith.mulf %7, %6 : vector<256x512xf32>
    %9 = arith.mulf %6, %6 : vector<256x512xf32>
    %10 = arith.mulf %9, %6 : vector<256x512xf32>
    %cst_6 = arith.constant 4.471500e-02 : f32
    %11 = vector.broadcast %cst_6 : f32 to vector<256x512xf32>
    %12 = arith.mulf %11, %10 : vector<256x512xf32>
    %13 = arith.addf %6, %12 : vector<256x512xf32>
    %cst_7 = arith.constant 0.797884583 : f32
    %14 = vector.broadcast %cst_7 : f32 to vector<256x512xf32>
    %15 = arith.mulf %14, %13 : vector<256x512xf32>
    %16 = math.tanh %15 : vector<256x512xf32>
    %cst_8 = arith.constant 1.000000e+00 : f32
    %17 = vector.broadcast %cst_8 : f32 to vector<256x512xf32>
    %18 = arith.addf %17, %16 : vector<256x512xf32>
    %19 = arith.mulf %8, %18 : vector<256x512xf32>
    %20 = arith.truncf %19 : vector<256x512xf32> to vector<256x512xbf16>
    %c0_9 = arith.constant 0 : index
    %c0_10 = arith.constant 0 : index
    %21 = vector.load %arg4[%c0_9, %c0_10] : memref<512x128xbf16, #tpu.memory_space<vmem>>, vector<512x128xbf16>
    %cst_11 = arith.constant dense<0.000000e+00> : vector<256x128xf32>
    %22 = tpu.matmul %20, %21, %cst_11 {dimension_numbers = #tpu.dot_dimension_numbers<[1], [0], [0], [1], [0, 0, 1, 1], [], []>} : vector<256x512xbf16>, vector<512x128xbf16>, vector<256x128xf32> -> vector<256x128xf32>
    %c0_12 = arith.constant 0 : index
    %c0_13 = arith.constant 0 : index
    %23 = vector.load %arg5[%c0_12, %c0_13] : memref<1x128xf32, #tpu.memory_space<vmem>>, vector<1x128xf32>
    %24 = vector.broadcast %23 : vector<1x128xf32> to vector<256x128xf32>
    %25 = arith.addf %22, %24 : vector<256x128xf32>
    %c0_14 = arith.constant 0 : index
    %c0_15 = arith.constant 0 : index
    %26 = vector.load %arg6[%c0_14, %c0_15] : memref<256x128xf32, #tpu.memory_space<vmem>>, vector<256x128xf32>
    tpu.vector_store %arg6[%c0_14, %c0_15], %25 {strides = array<i32>} : memref<256x128xf32, #tpu.memory_space<vmem>>, vector<256x128xf32>,
    return
  }
  func.func @transform_0(%arg0: i32) -> (i32, i32) {
    %c0_i32 = arith.constant 0 : i32
    %c0_i32_0 = arith.constant 0 : i32
    return %arg0, %c0_i32 : i32, i32
  }
  func.func @transform_1(%arg0: i32) -> (i32, i32) {
    %c0_i32 = arith.constant 0 : i32
    %c0_i32_0 = arith.constant 0 : i32
    %c0_i32_1 = arith.constant 0 : i32
    return %c0_i32, %c0_i32_0 : i32, i32
  }
  func.func @transform_2(%arg0: i32) -> (i32, i32) {
    %c0_i32 = arith.constant 0 : i32
    %c0_i32_0 = arith.constant 0 : i32
    %c0_i32_1 = arith.constant 0 : i32
    return %c0_i32, %c0_i32_0 : i32, i32
  }
  func.func @transform_3(%arg0: i32) -> (i32, i32) {
    %c0_i32 = arith.constant 0 : i32
    %c0_i32_0 = arith.constant 0 : i32
    %c0_i32_1 = arith.constant 0 : i32
    return %c0_i32, %c0_i32_0 : i32, i32
  }
  func.func @transform_4(%arg0: i32) -> (i32, i32) {
    %c0_i32 = arith.constant 0 : i32
    %c0_i32_0 = arith.constant 0 : i32
    %c0_i32_1 = arith.constant 0 : i32
    return %c0_i32, %c0_i32_0 : i32, i32
  }
  func.func @transform_5(%arg0: i32) -> (i32, i32) {
    %c0_i32 = arith.constant 0 : i32
    %c0_i32_0 = arith.constant 0 : i32
    return %arg0, %c0_i32 : i32, i32
  }
}

</mosaic_0001>

<llo_original>
// kernel: feed_forward.1
$region0: #{feed_forward.1}
  #allocation0 [shape = 'u32[]', space=smem, size = 0x4, offset = 0x4, fixed_abs, tag = 'smem constant byte address 0x4 - core index']
  #allocation1 [shape = 'u32[72,128]{1,0:T(1,128)}', space=vmem, size = 0x9000, scoped, tag = 'internal scratch']
  %s0 = inlined_call_operand.hbm [shape: f32[512,128], index: 0, kind: input, shape index: {}]
  %s1 = inlined_call_operand.hbm [shape: bf16[128,512], index: 1, kind: input, shape index: {}]
  %s2 = inlined_call_operand.vmem [shape: f32[1,512], index: 2, kind: input, shape index: {}]
  %s3 = inlined_call_operand.hbm [shape: bf16[512,128], index: 3, kind: input, shape index: {}]
  %s4 = inlined_call_operand.vmem [shape: f32[1,128], index: 4, kind: input, shape index: {}]
  %s5 = inlined_call_operand.hbm [shape: f32[512,128], index: 5, kind: output, shape index: {}]
  %s6 = sld [smem:[#allocation0]]
  $region65: #{feed_forward.1} parent=0
    _
  %s8 = ssub.s32 1, %s6
  %s9 = scalar_select 0, %s8, %s6
  $region1: #{feed_forward.1} parent=0
    #allocation2 [shape = 'u8[262144]{0}', space=vmem, size = 0x40000, scoped, tag = 'input window, operand 0']
    #allocation3 [shape = 's32[2]{0}', space=sflag, size = 0x8, scoped, tag = 'scoped memory for feed_forward.1']
    #allocation4 [shape = 's32[2]{0}', space=sflag, size = 0x8, scoped, tag = 'scoped memory for feed_forward.1']
    #allocation5 [shape = 'u8[131072]{0}', space=vmem, size = 0x20000, scoped, tag = 'input window, operand 1, single buffered']
    #allocation6 [shape = 's32[1]{0}', space=sflag, size = 0x4, scoped, tag = 'scoped memory for feed_forward.1']
    #allocation7 [shape = 'u8[131072]{0}', space=vmem, size = 0x20000, scoped, tag = 'input window, operand 3, single buffered']
    #allocation8 [shape = 'u8[262144]{0}', space=vmem, size = 0x40000, scoped, tag = 'output window, operand 0']
    %10 = vsyncpa [#allocation3], 0
    %s11 = scalar_lea.sflag [#allocation3], 1
    %12 = vsyncpa %s11, 0
    %13 = vsyncpa [#allocation6], 0
    %14 = vsyncpa [#allocation4], 0
    %s15 = scalar_lea.sflag [#allocation4], 1
    %16 = vsyncpa %s15, 0
    loop: start=0, step=1, limit=4
    $region2: #{feed_forward.1} parent=1 // loop_pre_header
      _
    $region3: #{feed_forward.1} parent=1 // loop_header
      %s18 = sphi 0, %s22
      %p19 = scmp.ge.s32.totalorder %s18, 4
      %s28 = sphi 0, %s30
      %s31 = sphi 0, %s28
      %s32 = sphi 0, %s31
      %s48 = sphi 0, %s32
      %s52 = sphi 0, %s52
      %s54 = sphi 0, %s52
      %s55 = sphi 0, %s54
      %s69 = sphi 0, %s55
      %s73 = sphi 0, %s73
      %s75 = sphi 0, %s73
      %s76 = sphi 0, %s75
      %s90 = sphi 0, %s76
      %s94 = sphi 0, %s94
      %s96 = sphi 0, %s94
      %s97 = sphi 0, %s96
      %s111 = sphi 0, %s97
      %s115 = sphi 0, %s115
      %s117 = sphi 0, %s115
      %s118 = sphi 0, %s117
      %s132 = sphi 0, %s118
      %s138 = sphi 0, %s140
      %s141 = sphi 0, %s138
      %s142 = sphi 0, %s141
      %s158 = sphi 0, %s142
    $region4: #{feed_forward.1} parent=1 // loop_header_branch
      %21 = sbr.rel (%p19) target = $region8
    $region5: #{feed_forward.1} parent=1 // loop_body
      %s23 = ssub.s32 %s18, 1
      %s24 = ssub.s32 %s18, 2
      %s25 = sadd.s32 %s18, 1
      %s26 = ssub.s32 %s18, %s25
      %p27 = scmp.eq.s32.totalorder %s26, 0
      %s29 = sadd.s32 %s28, 1
      %s30 = scalar_select %p27, %s28, %s29
      %p33 = pneg %p27
      %p34 = scmp.eq.s32.totalorder %s18, 1
      %p35 = por %p33, %p34
      %p36 = scmp.ne.s32.totalorder %s28, %s31
      %p37 = scmp.eq.s32.totalorder %s18, 0
      %p38 = por %p36, %p37
      %p39 = scmp.ne.s32.totalorder %s28, %s31
      %p40 = scmp.eq.s32.totalorder %s23, 1
      %p41 = por %p39, %p40
      %p42 = scmp.ne.s32.totalorder %s31, %s32
      %p43 = scmp.eq.s32.totalorder %s23, 0
      %p44 = por %p42, %p43
      %p45 = scmp.ne.s32.totalorder %s31, %s32
      %p46 = scmp.eq.s32.totalorder %s24, 1
      %p47 = por %p45, %p46
      %p49 = scmp.ne.s32.totalorder %s32, %s48
      %p50 = scmp.eq.s32.totalorder %s24, 0
      %p51 = por %p49, %p50
      %s53 = sadd.s32 %s52, 1
      %p56 = scmp.eq.s32.totalorder %s18, 1
      %p57 = scmp.ne.s32.totalorder %s52, %s54
      %p58 = scmp.eq.s32.totalorder %s18, 0
      %p59 = por %p57, %p58
      %p60 = scmp.ne.s32.totalorder %s52, %s54
      %p61 = scmp.eq.s32.totalorder %s23, 1
      %p62 = por %p60, %p61
      %p63 = scmp.ne.s32.totalorder %s54, %s55
      %p64 = scmp.eq.s32.totalorder %s23, 0
      %p65 = por %p63, %p64
      %p66 = scmp.ne.s32.totalorder %s54, %s55
      %p67 = scmp.eq.s32.totalorder %s24, 1
      %p68 = por %p66, %p67
      %p70 = scmp.ne.s32.totalorder %s55, %s69
      %p71 = scmp.eq.s32.totalorder %s24, 0
      %p72 = por %p70, %p71
      %s74 = sadd.s32 %s73, 1
      %p77 = scmp.eq.s32.totalorder %s18, 1
      %p78 = scmp.ne.s32.totalorder %s73, %s75
      %p79 = scmp.eq.s32.totalorder %s18, 0
      %p80 = por %p78, %p79
      %p81 = scmp.ne.s32.totalorder %s73, %s75
      %p82 = scmp.eq.s32.totalorder %s23, 1
      %p83 = por %p81, %p82
      %p84 = scmp.ne.s32.totalorder %s75, %s76
      %p85 = scmp.eq.s32.totalorder %s23, 0
      %p86 = por %p84, %p85
      %p87 = scmp.ne.s32.totalorder %s75, %s76
      %p88 = scmp.eq.s32.totalorder %s24, 1
      %p89 = por %p87, %p88
      %p91 = scmp.ne.s32.totalorder %s76, %s90
      %p92 = scmp.eq.s32.totalorder %s24, 0
      %p93 = por %p91, %p92
      %s95 = sadd.s32 %s94, 1
      %p98 = scmp.eq.s32.totalorder %s18, 1
      %p99 = scmp.ne.s32.totalorder %s94, %s96
      %p100 = scmp.eq.s32.totalorder %s18, 0
      %p101 = por %p99, %p100
      %p102 = scmp.ne.s32.totalorder %s94, %s96
      %p103 = scmp.eq.s32.totalorder %s23, 1
      %p104 = por %p102, %p103
      %p105 = scmp.ne.s32.totalorder %s96, %s97
      %p106 = scmp.eq.s32.totalorder %s23, 0
      %p107 = por %p105, %p106
      %p108 = scmp.ne.s32.totalorder %s96, %s97
      %p109 = scmp.eq.s32.totalorder %s24, 1
      %p110 = por %p108, %p109
      %p112 = scmp.ne.s32.totalorder %s97, %s111
      %p113 = scmp.eq.s32.totalorder %s24, 0
      %p114 = por %p112, %p113
      %s116 = sadd.s32 %s115, 1
      %p119 = scmp.eq.s32.totalorder %s18, 1
      %p120 = scmp.ne.s32.totalorder %s115, %s117
      %p121 = scmp.eq.s32.totalorder %s18, 0
      %p122 = por %p120, %p121
      %p123 = scmp.ne.s32.totalorder %s115, %s117
      %p124 = scmp.eq.s32.totalorder %s23, 1
      %p125 = por %p123, %p124
      %p126 = scmp.ne.s32.totalorder %s117, %s118
      %p127 = scmp.eq.s32.totalorder %s23, 0
      %p128 = por %p126, %p127
      %p129 = scmp.ne.s32.totalorder %s117, %s118
      %p130 = scmp.eq.s32.totalorder %s24, 1
      %p131 = por %p129, %p130
      %p133 = scmp.ne.s32.totalorder %s118, %s132
      %p134 = scmp.eq.s32.totalorder %s24, 0
      %p135 = por %p133, %p134
      %s136 = ssub.s32 %s18, %s25
      %p137 = scmp.eq.s32.totalorder %s136, 0
      %s139 = sadd.s32 %s138, 1
      %s140 = scalar_select %p137, %s138, %s139
      %p143 = pneg %p137
      %p144 = scmp.eq.s32.totalorder %s18, 1
      %p145 = por %p143, %p144
      %p146 = scmp.ne.s32.totalorder %s138, %s141
      %p147 = scmp.eq.s32.totalorder %s18, 0
      %p148 = por %p146, %p147
      %p149 = scmp.ne.s32.totalorder %s138, %s141
      %p150 = scmp.eq.s32.totalorder %s23, 1
      %p151 = por %p149, %p150
      %p152 = scmp.ne.s32.totalorder %s141, %s142
      %p153 = scmp.eq.s32.totalorder %s23, 0
      %p154 = por %p152, %p153
      %p155 = scmp.ne.s32.totalorder %s141, %s142
      %p156 = scmp.eq.s32.totalorder %s24, 1
      %p157 = por %p155, %p156
      %p159 = scmp.ne.s32.totalorder %s142, %s158
      %p160 = scmp.eq.s32.totalorder %s24, 0
      %p161 = por %p159, %p160
      %p162 = scmp.le.s32.totalorder 1, %s18
      %p163 = scmp.lt.s32.totalorder %s18, 3
      %p164 = pnand %p162, %p163
      %p165 = pneg %p164
      // Predicated region
      $region9: #{feed_forward.1} parent=5 // pred_check
        _
      $region10: #{feed_forward.1} parent=5 // pred_check_branch
        %167 = sbr.rel (%p164) target = $region12
      $region11: #{feed_forward.1} parent=5 // pred_region
        %s168 = ssub.s32 %s18, 1
        // Predicated region
        $region13: #{feed_forward.1} parent=11 // pred_check
          %p169 = pneg %p65
        $region14: #{feed_forward.1} parent=11 // pred_check_branch
          %171 = sbr.rel (%p169) target = $region16
        $region15: #{feed_forward.1} parent=11 // pred_region
          %173 = vsyncadd [#allocation6], 0
          %s174 = sshll.u32 %s1, 4
          %s175 = int_to_ptr.hbm [resolvable:$true] %s174
          %s176 = sshll.u32 [#allocation5], 4
          %s177 = int_to_ptr.vmem [resolvable:$true] %s176
          %182 = dma.hbm_to_vmem [thread:$0]  %s175, 4096, %s177, [#allocation6], 256, 256, 16
        $region16: #{feed_forward.1} parent=11 // pred_fallthru
          _
        // Predicated region
        $region17: #{feed_forward.1} parent=11 // pred_check
          %p183 = pneg %p86
        $region18: #{feed_forward.1} parent=11 // pred_check_branch
          %185 = sbr.rel (%p183) target = $region20
        $region19: #{feed_forward.1} parent=11 // pred_region
          _
        $region20: #{feed_forward.1} parent=11 // pred_fallthru
          _
        // Predicated region
        $region21: #{feed_forward.1} parent=11 // pred_check
          %p186 = pneg %p107
        $region22: #{feed_forward.1} parent=11 // pred_check_branch
          %188 = sbr.rel (%p186) target = $region24
        $region23: #{feed_forward.1} parent=11 // pred_region
          %190 = vsyncadd [#allocation6], 0
          %s191 = sshll.u32 %s3, 4
          %s192 = int_to_ptr.hbm [resolvable:$true] %s191
          %s193 = sshll.u32 [#allocation7], 4
          %s194 = int_to_ptr.vmem [resolvable:$true] %s193
          %199 = dma.hbm_to_vmem [thread:$0]  %s192, 4096, %s194, [#allocation6], 64, 64, 4
        $region24: #{feed_forward.1} parent=11 // pred_fallthru
          _
        // Predicated region
        $region25: #{feed_forward.1} parent=11 // pred_check
          %p200 = pneg %p128
        $region26: #{feed_forward.1} parent=11 // pred_check_branch
          %202 = sbr.rel (%p200) target = $region28
        $region27: #{feed_forward.1} parent=11 // pred_region
          _
        $region28: #{feed_forward.1} parent=11 // pred_fallthru
          _
      $region12: #{feed_forward.1} parent=5 // pred_fallthru
        _
      %p203 = scmp.lt.s32.totalorder %s18, 2
      // Predicated region
      $region29: #{feed_forward.1} parent=5 // pred_check
        %p204 = pneg %p203
      $region30: #{feed_forward.1} parent=5 // pred_check_branch
        %206 = sbr.rel (%p204) target = $region32
      $region31: #{feed_forward.1} parent=5 // pred_region
        // Predicated region
        $region33: #{feed_forward.1} parent=31 // pred_check
          %p207 = pneg %p38
        $region34: #{feed_forward.1} parent=31 // pred_check_branch
          %209 = sbr.rel (%p207) target = $region36
        $region35: #{feed_forward.1} parent=31 // pred_region
          %s210 = sand.u32 %s28, 1
          %s211 = scalar_lea.sflag [#allocation3], %s210
          %s212 = sand.u32 %s28, 1
          %s213 = smul.addr %s212, 256
          %s214 = scalar_lea.vmem [#allocation2], %s213
          %s215 = smul.u32 32, %s18
          %217 = vsyncadd %s211, 0
          %s218 = smul.addr %s215, 8
          %s219 = scalar_lea.hbm %s0, %s218
          %s220 = sshll.u32 %s219, 4
          %s221 = int_to_ptr.hbm [resolvable:$true] %s220
          %s222 = sshll.u32 %s214, 4
          %s223 = int_to_ptr.vmem [resolvable:$true] %s222
          %228 = dma.hbm_to_vmem [thread:$0]  %s221, 4096, %s223, %s211, 128, 128, 8
        $region36: #{feed_forward.1} parent=31 // pred_fallthru
          _
      $region32: #{feed_forward.1} parent=5 // pred_fallthru
        _
      %p229 = scmp.le.s32.totalorder 1, %s18
      %p230 = scmp.lt.s32.totalorder %s18, 3
      %p231 = pnand %p229, %p230
      %p232 = pneg %p231
      // Predicated region
      $region37: #{feed_forward.1} parent=5 // pred_check
        _
      $region38: #{feed_forward.1} parent=5 // pred_check_branch
        %234 = sbr.rel (%p231) target = $region40
      $region39: #{feed_forward.1} parent=5 // pred_region
        %s235 = ssub.s32 %s18, 1
        %s236 = sand.u32 %s31, 1
        %s237 = scalar_lea.sflag [#allocation3], %s236
        %s238 = sand.u32 %s31, 1
        %s239 = smul.addr %s238, 256
        %s240 = scalar_lea.vmem [#allocation2], %s239
        // Predicated region
        $region41: #{feed_forward.1} parent=39 // pred_check
          %p241 = pneg %p44
        $region42: #{feed_forward.1} parent=39 // pred_check_branch
          %243 = sbr.rel (%p241) target = $region44
        $region43: #{feed_forward.1} parent=39 // pred_region
          %245 = dma.done %s237, 4096
        $region44: #{feed_forward.1} parent=39 // pred_fallthru
          _
        // Predicated region
        $region45: #{feed_forward.1} parent=39 // pred_check
          %p246 = pneg %p65
        $region46: #{feed_forward.1} parent=39 // pred_check_branch
          %248 = sbr.rel (%p246) target = $region48
        $region47: #{feed_forward.1} parent=39 // pred_region
          %250 = dma.done [#allocation6], 4096
        $region48: #{feed_forward.1} parent=39 // pred_fallthru
          _
        // Predicated region
        $region49: #{feed_forward.1} parent=39 // pred_check
          %p251 = pneg %p107
        $region50: #{feed_forward.1} parent=39 // pred_check_branch
          %253 = sbr.rel (%p251) target = $region52
        $region51: #{feed_forward.1} parent=39 // pred_region
          %255 = dma.done [#allocation6], 4096
        $region52: #{feed_forward.1} parent=39 // pred_fallthru
          _
        %s256 = sand.u32 %s31, 1
        %s257 = scalar_lea.sflag [#allocation3], %s256
        %s258 = sand.u32 %s31, 1
        %s259 = smul.addr %s258, 256
        %s260 = scalar_lea.vmem [#allocation2], %s259
        %p261 = pneg %p44
        %p262 = pneg %p41
        %p263 = pneg %p65
        %p264 = pneg %p62
        %p265 = pneg %p86
        %p266 = pneg %p83
        %p267 = pneg %p107
        %p268 = pneg %p104
        %p269 = pneg %p128
        %p270 = pneg %p125
        %p271 = pneg %p154
        %p272 = pneg %p151
        %s273 = sand.u32 %s141, 1
        %s274 = scalar_lea.sflag [#allocation4], %s273
        %s275 = sand.u32 %s141, 1
        %s276 = smul.addr %s275, 256
        %s277 = scalar_lea.vmem [#allocation8], %s276
        %s278 = smul.u32 32, %s23
        %s279 = smul.u32 32, %s23
        %v280 = vld [vmem:[%s240] sm:$0xff]
        %v281 = vld [vmem:[%s240 + $0x8] sm:$0xff]
        %v282 = vld [vmem:[%s240 + $0x10] sm:$0xff]
        %v283 = vld [vmem:[%s240 + $0x18] sm:$0xff]
        %v284 = vld [vmem:[%s240 + $0x20] sm:$0xff]
        %v285 = vld [vmem:[%s240 + $0x28] sm:$0xff]
        %v286 = vld [vmem:[%s240 + $0x30] sm:$0xff]
        %v287 = vld [vmem:[%s240 + $0x38] sm:$0xff]
        %v288 = vld [vmem:[%s240 + $0x40] sm:$0xff]
        %v289 = vld [vmem:[%s240 + $0x48] sm:$0xff]
        %v290 = vld [vmem:[%s240 + $0x50] sm:$0xff]
        %v291 = vld [vmem:[%s240 + $0x58] sm:$0xff]
        %v292 = vld [vmem:[%s240 + $0x60] sm:$0xff]
        %v293 = vld [vmem:[%s240 + $0x68] sm:$0xff]
        %v294 = vld [vmem:[%s240 + $0x70] sm:$0xff]
        %v295 = vld [vmem:[%s240 + $0x78] sm:$0xff]
        %v296 = vld [vmem:[%s240 + $0x80] sm:$0xff]
        %v297 = vld [vmem:[%s240 + $0x88] sm:$0xff]
        %v298 = vld [vmem:[%s240 + $0x90] sm:$0xff]
        %v299 = vld [vmem:[%s240 + $0x98] sm:$0xff]
        %v300 = vld [vmem:[%s240 + $0xa0] sm:$0xff]
        %v301 = vld [vmem:[%s240 + $0xa8] sm:$0xff]
        %v302 = vld [vmem:[%s240 + $0xb0] sm:$0xff]
        %v303 = vld [vmem:[%s240 + $0xb8] sm:$0xff]
        %v304 = vld [vmem:[%s240 + $0xc0] sm:$0xff]
        %v305 = vld [vmem:[%s240 + $0xc8] sm:$0xff]
        %v306 = vld [vmem:[%s240 + $0xd0] sm:$0xff]
        %v307 = vld [vmem:[%s240 + $0xd8] sm:$0xff]
        %v308 = vld [vmem:[%s240 + $0xe0] sm:$0xff]
        %v309 = vld [vmem:[%s240 + $0xe8] sm:$0xff]
        %v310 = vld [vmem:[%s240 + $0xf0] sm:$0xff]
        %v311 = vld [vmem:[%s240 + $0xf8] sm:$0xff]
        %v312 = vpack.c.bf16 %v281, %v280
        %v313 = vpack.c.bf16 %v283, %v282
        %v314 = vpack.c.bf16 %v285, %v284
        %v315 = vpack.c.bf16 %v287, %v286
        %v316 = vpack.c.bf16 %v289, %v288
        %v317 = vpack.c.bf16 %v291, %v290
        %v318 = vpack.c.bf16 %v293, %v292
        %v319 = vpack.c.bf16 %v295, %v294
        %v320 = vpack.c.bf16 %v297, %v296
        %v321 = vpack.c.bf16 %v299, %v298
        %v322 = vpack.c.bf16 %v301, %v300
        %v323 = vpack.c.bf16 %v303, %v302
        %v324 = vpack.c.bf16 %v305, %v304
        %v325 = vpack.c.bf16 %v307, %v306
        %v326 = vpack.c.bf16 %v309, %v308
        %v327 = vpack.c.bf16 %v311, %v310
        %v328 = vld [vmem:[#allocation5] sm:$0xff]
        %v329 = vld [vmem:[#allocation5 + $0x8] sm:$0xff]
        %v330 = vld [vmem:[#allocation5 + $0x10] sm:$0xff]
        %v331 = vld [vmem:[#allocation5 + $0x18] sm:$0xff]
        %v332 = vld [vmem:[#allocation5 + $0x20] sm:$0xff]
        %v333 = vld [vmem:[#allocation5 + $0x28] sm:$0xff]
        %v334 = vld [vmem:[#allocation5 + $0x30] sm:$0xff]
        %v335 = vld [vmem:[#allocation5 + $0x38] sm:$0xff]
        %v336 = vld [vmem:[#allocation5 + $0x40] sm:$0xff]
        %v337 = vld [vmem:[#allocation5 + $0x48] sm:$0xff]
        %v338 = vld [vmem:[#allocation5 + $0x50] sm:$0xff]
        %v339 = vld [vmem:[#allocation5 + $0x58] sm:$0xff]
        %v340 = vld [vmem:[#allocation5 + $0x60] sm:$0xff]
        %v341 = vld [vmem:[#allocation5 + $0x68] sm:$0xff]
        %v342 = vld [vmem:[#allocation5 + $0x70] sm:$0xff]
        %v343 = vld [vmem:[#allocation5 + $0x78] sm:$0xff]
        %v344 = vld [vmem:[#allocation5 + $0x80] sm:$0xff]
        %v345 = vld [vmem:[#allocation5 + $0x88] sm:$0xff]
        %v346 = vld [vmem:[#allocation5 + $0x90] sm:$0xff]
        %v347 = vld [vmem:[#allocation5 + $0x98] sm:$0xff]
        %v348 = vld [vmem:[#allocation5 + $0xa0] sm:$0xff]
        %v349 = vld [vmem:[#allocation5 + $0xa8] sm:$0xff]
        %v350 = vld [vmem:[#allocation5 + $0xb0] sm:$0xff]
        %v351 = vld [vmem:[#allocation5 + $0xb8] sm:$0xff]
        %v352 = vld [vmem:[#allocation5 + $0xc0] sm:$0xff]
        %v353 = vld [vmem:[#allocation5 + $0xc8] sm:$0xff]
        %v354 = vld [vmem:[#allocation5 + $0xd0] sm:$0xff]
        %v355 = vld [vmem:[#allocation5 + $0xd8] sm:$0xff]
        %v356 = vld [vmem:[#allocation5 + $0xe0] sm:$0xff]
        %v357 = vld [vmem:[#allocation5 + $0xe8] sm:$0xff]
        %v358 = vld [vmem:[#allocation5 + $0xf0] sm:$0xff]
        %v359 = vld [vmem:[#allocation5 + $0xf8] sm:$0xff]
        %v360 = vld [vmem:[%s2] sm:$0xf]
        %v362 = vperm.slane %v360, 0
        %v363 = vperm.slane %v360, 1
        %v364 = vperm.slane %v360, 2
        %v365 = vperm.slane %v360, 3
        %v402 = vunpack.c.l.b16 %v328
        %v403 = vunpack.c.h.b16 %v328
        %v404 = vunpack.c.l.b16 %v329
        %v405 = vunpack.c.h.b16 %v329
        %v406 = vunpack.c.l.b16 %v330
        %v407 = vunpack.c.h.b16 %v330
        %v408 = vunpack.c.l.b16 %v331
        %v409 = vunpack.c.h.b16 %v331
        %v410 = vunpack.c.l.b16 %v332
        %v411 = vunpack.c.h.b16 %v332
        %v412 = vunpack.c.l.b16 %v333
        %v413 = vunpack.c.h.b16 %v333
        %v414 = vunpack.c.l.b16 %v334
        %v415 = vunpack.c.h.b16 %v334
        %v416 = vunpack.c.l.b16 %v335
        %v417 = vunpack.c.h.b16 %v335
        %v418 = vunpack.c.l.b16 %v336
        %v419 = vunpack.c.h.b16 %v336
        %v420 = vunpack.c.l.b16 %v337
        %v421 = vunpack.c.h.b16 %v337
        %v422 = vunpack.c.l.b16 %v338
        %v423 = vunpack.c.h.b16 %v338
        %v424 = vunpack.c.l.b16 %v339
        %v425 = vunpack.c.h.b16 %v339
        %v426 = vunpack.c.l.b16 %v340
        %v427 = vunpack.c.h.b16 %v340
        %v428 = vunpack.c.l.b16 %v341
        %v429 = vunpack.c.h.b16 %v341
        %v430 = vunpack.c.l.b16 %v342
        %v431 = vunpack.c.h.b16 %v342
        %v432 = vunpack.c.l.b16 %v343
        %v433 = vunpack.c.h.b16 %v343
        %v434 = vunpack.c.l.b16 %v344
        %v435 = vunpack.c.h.b16 %v344
        %v436 = vunpack.c.l.b16 %v345
        %v437 = vunpack.c.h.b16 %v345
        %v438 = vunpack.c.l.b16 %v346
        %v439 = vunpack.c.h.b16 %v346
        %v440 = vunpack.c.l.b16 %v347
        %v441 = vunpack.c.h.b16 %v347
        %v442 = vunpack.c.l.b16 %v348
        %v443 = vunpack.c.h.b16 %v348
        %v444 = vunpack.c.l.b16 %v349
        %v445 = vunpack.c.h.b16 %v349
        %v446 = vunpack.c.l.b16 %v350
        %v447 = vunpack.c.h.b16 %v350
        %v448 = vunpack.c.l.b16 %v351
        %v449 = vunpack.c.h.b16 %v351
        %v450 = vunpack.c.l.b16 %v352
        %v451 = vunpack.c.h.b16 %v352
        %v452 = vunpack.c.l.b16 %v353
        %v453 = vunpack.c.h.b16 %v353
        %v454 = vunpack.c.l.b16 %v354
        %v455 = vunpack.c.h.b16 %v354
        %v456 = vunpack.c.l.b16 %v355
        %v457 = vunpack.c.h.b16 %v355
        %v458 = vunpack.c.l.b16 %v356
        %v459 = vunpack.c.h.b16 %v356
        %v460 = vunpack.c.l.b16 %v357
        %v461 = vunpack.c.h.b16 %v357
        %v462 = vunpack.c.l.b16 %v358
        %v463 = vunpack.c.h.b16 %v358
        %v464 = vunpack.c.l.b16 %v359
        %v465 = vunpack.c.h.b16 %v359
        %v466 = vpack.c.b16 %v406, %v402
        %v467 = vpack.c.b16 %v407, %v403
        %v468 = vpack.c.b16 %v408, %v404
        %v469 = vpack.c.b16 %v409, %v405
        %v470 = vpack.c.b16 %v414, %v410
        %v471 = vpack.c.b16 %v415, %v411
        %v472 = vpack.c.b16 %v416, %v412
        %v473 = vpack.c.b16 %v417, %v413
        %v474 = vpack.c.b16 %v422, %v418
        %v475 = vpack.c.b16 %v423, %v419
        %v476 = vpack.c.b16 %v424, %v420
        %v477 = vpack.c.b16 %v425, %v421
        %v478 = vpack.c.b16 %v430, %v426
        %v479 = vpack.c.b16 %v431, %v427
        %v480 = vpack.c.b16 %v432, %v428
        %v481 = vpack.c.b16 %v433, %v429
        %v482 = vpack.c.b16 %v438, %v434
        %v483 = vpack.c.b16 %v439, %v435
        %v484 = vpack.c.b16 %v440, %v436
        %v485 = vpack.c.b16 %v441, %v437
        %v486 = vpack.c.b16 %v446, %v442
        %v487 = vpack.c.b16 %v447, %v443
        %v488 = vpack.c.b16 %v448, %v444
        %v489 = vpack.c.b16 %v449, %v445
        %v490 = vpack.c.b16 %v454, %v450
        %v491 = vpack.c.b16 %v455, %v451
        %v492 = vpack.c.b16 %v456, %v452
        %v493 = vpack.c.b16 %v457, %v453
        %v494 = vpack.c.b16 %v462, %v458
        %v495 = vpack.c.b16 %v463, %v459
        %v496 = vpack.c.b16 %v464, %v460
        %v497 = vpack.c.b16 %v465, %v461
        %530 = vmatpush.bf16.msra.mxu0 %v494
        %531 = vmatpush.bf16.msra.mxu0 %v490
        %532 = vmatpush.bf16.msra.mxu0 %v486
        %533 = vmatpush.bf16.msra.mxu0 %v482
        %534 = vmatpush.bf16.msra.mxu0 %v478
        %535 = vmatpush.bf16.msra.mxu0 %v474
        %536 = vmatpush.bf16.msra.mxu0 %v470
        %537 = vmatpush.bf16.msra.mxu0 %v466
        %538 = vmatmul.bf16.gmra.mxu0 %v312
        %v539 = vpop.f32.mrf.mxu0
        %v540 = vadd.f32 %v362, %v539
        %v541 = vpop.f32.mrf.mxu0
        %v542 = vadd.f32 %v362, %v541
        %543 = vmatmul.bf16.gmra.mxu0 %v313
        %v544 = vpop.f32.mrf.mxu0
        %v545 = vadd.f32 %v362, %v544
        %v546 = vpop.f32.mrf.mxu0
        %v547 = vadd.f32 %v362, %v546
        %548 = vmatmul.bf16.gmra.mxu0 %v314
        %v549 = vpop.f32.mrf.mxu0
        %v550 = vadd.f32 %v362, %v549
        %v551 = vpop.f32.mrf.mxu0
        %v552 = vadd.f32 %v362, %v551
        %553 = vmatmul.bf16.gmra.mxu0 %v315
        %v554 = vpop.f32.mrf.mxu0
        %v555 = vadd.f32 %v362, %v554
        %v556 = vpop.f32.mrf.mxu0
        %v557 = vadd.f32 %v362, %v556
        %558 = vmatmul.bf16.gmra.mxu0 %v316
        %v559 = vpop.f32.mrf.mxu0
        %v560 = vadd.f32 %v362, %v559
        %v561 = vpop.f32.mrf.mxu0
        %v562 = vadd.f32 %v362, %v561
        %563 = vmatmul.bf16.gmra.mxu0 %v317
        %v564 = vpop.f32.mrf.mxu0
        %v565 = vadd.f32 %v362, %v564
        %v566 = vpop.f32.mrf.mxu0
        %v567 = vadd.f32 %v362, %v566
        %568 = vmatmul.bf16.gmra.mxu0 %v318
        %v569 = vpop.f32.mrf.mxu0
        %v570 = vadd.f32 %v362, %v569
        %v571 = vpop.f32.mrf.mxu0
        %v572 = vadd.f32 %v362, %v571
        %573 = vmatmul.bf16.gmra.mxu0 %v319
        %v574 = vpop.f32.mrf.mxu0
        %v575 = vadd.f32 %v362, %v574
        %v576 = vpop.f32.mrf.mxu0
        %v577 = vadd.f32 %v362, %v576
        %578 = vmatmul.bf16.gmra.mxu0 %v320
        %v579 = vpop.f32.mrf.mxu0
        %v580 = vadd.f32 %v362, %v579
        %v581 = vpop.f32.mrf.mxu0
        %v582 = vadd.f32 %v362, %v581
        %583 = vmatmul.bf16.gmra.mxu0 %v321
        %v584 = vpop.f32.mrf.mxu0
        %v585 = vadd.f32 %v362, %v584
        %v586 = vpop.f32.mrf.mxu0
        %v587 = vadd.f32 %v362, %v586
        %588 = vmatmul.bf16.gmra.mxu0 %v322
        %v589 = vpop.f32.mrf.mxu0
        %v590 = vadd.f32 %v362, %v589
        %v591 = vpop.f32.mrf.mxu0
        %v592 = vadd.f32 %v362, %v591
        %593 = vmatmul.bf16.gmra.mxu0 %v323
        %v594 = vpop.f32.mrf.mxu0
        %v595 = vadd.f32 %v362, %v594
        %v596 = vpop.f32.mrf.mxu0
        %v597 = vadd.f32 %v362, %v596
        %598 = vmatmul.bf16.gmra.mxu0 %v324
        %v599 = vpop.f32.mrf.mxu0
        %v600 = vadd.f32 %v362, %v599
        %v601 = vpop.f32.mrf.mxu0
        %v602 = vadd.f32 %v362, %v601
        %603 = vmatmul.bf16.gmra.mxu0 %v325
        %v604 = vpop.f32.mrf.mxu0
        %v605 = vadd.f32 %v362, %v604
        %v606 = vpop.f32.mrf.mxu0
        %v607 = vadd.f32 %v362, %v606
        %608 = vmatmul.bf16.gmra.mxu0 %v326
        %v609 = vpop.f32.mrf.mxu0
        %v610 = vadd.f32 %v362, %v609
        %v611 = vpop.f32.mrf.mxu0
        %v612 = vadd.f32 %v362, %v611
        %613 = vmatmul.bf16.gmra.mxu0 %v327
        %v614 = vpop.f32.mrf.mxu0
        %v615 = vadd.f32 %v362, %v614
        %v616 = vpop.f32.mrf.mxu0
        %v617 = vadd.f32 %v362, %v616
        %618 = vdwg.mxu0
        %619 = vmatpush.bf16.msra.mxu0 %v495
        %620 = vmatpush.bf16.msra.mxu0 %v491
        %621 = vmatpush.bf16.msra.mxu0 %v487
        %622 = vmatpush.bf16.msra.mxu0 %v483
        %623 = vmatpush.bf16.msra.mxu0 %v479
        %624 = vmatpush.bf16.msra.mxu0 %v475
        %625 = vmatpush.bf16.msra.mxu0 %v471
        %626 = vmatpush.bf16.msra.mxu0 %v467
        %627 = vmatmul.bf16.gmra.mxu0 %v312
        %v628 = vpop.f32.mrf.mxu0
        %v629 = vadd.f32 %v363, %v628
        %v630 = vpop.f32.mrf.mxu0
        %v631 = vadd.f32 %v363, %v630
        %632 = vmatmul.bf16.gmra.mxu0 %v313
        %v633 = vpop.f32.mrf.mxu0
        %v634 = vadd.f32 %v363, %v633
        %v635 = vpop.f32.mrf.mxu0
        %v636 = vadd.f32 %v363, %v635
        %637 = vmatmul.bf16.gmra.mxu0 %v314
        %v638 = vpop.f32.mrf.mxu0
        %v639 = vadd.f32 %v363, %v638
        %v640 = vpop.f32.mrf.mxu0
        %v641 = vadd.f32 %v363, %v640
        %642 = vmatmul.bf16.gmra.mxu0 %v315
        %v643 = vpop.f32.mrf.mxu0
        %v644 = vadd.f32 %v363, %v643
        %v645 = vpop.f32.mrf.mxu0
        %v646 = vadd.f32 %v363, %v645
        %647 = vmatmul.bf16.gmra.mxu0 %v316
        %v648 = vpop.f32.mrf.mxu0
        %v649 = vadd.f32 %v363, %v648
        %v650 = vpop.f32.mrf.mxu0
        %v651 = vadd.f32 %v363, %v650
        %652 = vmatmul.bf16.gmra.mxu0 %v317
        %v653 = vpop.f32.mrf.mxu0
        %v654 = vadd.f32 %v363, %v653
        %v655 = vpop.f32.mrf.mxu0
        %v656 = vadd.f32 %v363, %v655
        %657 = vmatmul.bf16.gmra.mxu0 %v318
        %v658 = vpop.f32.mrf.mxu0
        %v659 = vadd.f32 %v363, %v658
        %v660 = vpop.f32.mrf.mxu0
        %v661 = vadd.f32 %v363, %v660
        %662 = vmatmul.bf16.gmra.mxu0 %v319
        %v663 = vpop.f32.mrf.mxu0
        %v664 = vadd.f32 %v363, %v663
        %v665 = vpop.f32.mrf.mxu0
        %v666 = vadd.f32 %v363, %v665
        %667 = vmatmul.bf16.gmra.mxu0 %v320
        %v668 = vpop.f32.mrf.mxu0
        %v669 = vadd.f32 %v363, %v668
        %v670 = vpop.f32.mrf.mxu0
        %v671 = vadd.f32 %v363, %v670
        %672 = vmatmul.bf16.gmra.mxu0 %v321
        %v673 = vpop.f32.mrf.mxu0
        %v674 = vadd.f32 %v363, %v673
        %v675 = vpop.f32.mrf.mxu0
        %v676 = vadd.f32 %v363, %v675
        %677 = vmatmul.bf16.gmra.mxu0 %v322
        %v678 = vpop.f32.mrf.mxu0
        %v679 = vadd.f32 %v363, %v678
        %v680 = vpop.f32.mrf.mxu0
        %v681 = vadd.f32 %v363, %v680
        %682 = vmatmul.bf16.gmra.mxu0 %v323
        %v683 = vpop.f32.mrf.mxu0
        %v684 = vadd.f32 %v363, %v683
        %v685 = vpop.f32.mrf.mxu0
        %v686 = vadd.f32 %v363, %v685
        %687 = vmatmul.bf16.gmra.mxu0 %v324
        %v688 = vpop.f32.mrf.mxu0
        %v689 = vadd.f32 %v363, %v688
        %v690 = vpop.f32.mrf.mxu0
        %v691 = vadd.f32 %v363, %v690
        %692 = vmatmul.bf16.gmra.mxu0 %v325
        %v693 = vpop.f32.mrf.mxu0
        %v694 = vadd.f32 %v363, %v693
        %v695 = vpop.f32.mrf.mxu0
        %v696 = vadd.f32 %v363, %v695
        %697 = vmatmul.bf16.gmra.mxu0 %v326
        %v698 = vpop.f32.mrf.mxu0
        %v699 = vadd.f32 %v363, %v698
        %v700 = vpop.f32.mrf.mxu0
        %v701 = vadd.f32 %v363, %v700
        %702 = vmatmul.bf16.gmra.mxu0 %v327
        %v703 = vpop.f32.mrf.mxu0
        %v704 = vadd.f32 %v363, %v703
        %v705 = vpop.f32.mrf.mxu0
        %v706 = vadd.f32 %v363, %v705
        %707 = vdwg.mxu0
        %708 = vmatpush.bf16.msra.mxu0 %v496
        %709 = vmatpush.bf16.msra.mxu0 %v492
        %710 = vmatpush.bf16.msra.mxu0 %v488
        %711 = vmatpush.bf16.msra.mxu0 %v484
        %712 = vmatpush.bf16.msra.mxu0 %v480
        %713 = vmatpush.bf16.msra.mxu0 %v476
        %714 = vmatpush.bf16.msra.mxu0 %v472
        %715 = vmatpush.bf16.msra.mxu0 %v468
        %716 = vmatmul.bf16.gmra.mxu0 %v312
        %v717 = vpop.f32.mrf.mxu0
        %v718 = vadd.f32 %v364, %v717
        %v719 = vpop.f32.mrf.mxu0
        %v720 = vadd.f32 %v364, %v719
        %721 = vmatmul.bf16.gmra.mxu0 %v313
        %v722 = vpop.f32.mrf.mxu0
        %v723 = vadd.f32 %v364, %v722
        %v724 = vpop.f32.mrf.mxu0
        %v725 = vadd.f32 %v364, %v724
        %726 = vmatmul.bf16.gmra.mxu0 %v314
        %v727 = vpop.f32.mrf.mxu0
        %v728 = vadd.f32 %v364, %v727
        %v729 = vpop.f32.mrf.mxu0
        %v730 = vadd.f32 %v364, %v729
        %731 = vmatmul.bf16.gmra.mxu0 %v315
        %v732 = vpop.f32.mrf.mxu0
        %v733 = vadd.f32 %v364, %v732
        %v734 = vpop.f32.mrf.mxu0
        %v735 = vadd.f32 %v364, %v734
        %736 = vmatmul.bf16.gmra.mxu0 %v316
        %v737 = vpop.f32.mrf.mxu0
        %v738 = vadd.f32 %v364, %v737
        %v739 = vpop.f32.mrf.mxu0
        %v740 = vadd.f32 %v364, %v739
        %741 = vmatmul.bf16.gmra.mxu0 %v317
        %v742 = vpop.f32.mrf.mxu0
        %v743 = vadd.f32 %v364, %v742
        %v744 = vpop.f32.mrf.mxu0
        %v745 = vadd.f32 %v364, %v744
        %746 = vmatmul.bf16.gmra.mxu0 %v318
        %v747 = vpop.f32.mrf.mxu0
        %v748 = vadd.f32 %v364, %v747
        %v749 = vpop.f32.mrf.mxu0
        %v750 = vadd.f32 %v364, %v749
        %751 = vmatmul.bf16.gmra.mxu0 %v319
        %v752 = vpop.f32.mrf.mxu0
        %v753 = vadd.f32 %v364, %v752
        %v754 = vpop.f32.mrf.mxu0
        %v755 = vadd.f32 %v364, %v754
        %756 = vmatmul.bf16.gmra.mxu0 %v320
        %v757 = vpop.f32.mrf.mxu0
        %v758 = vadd.f32 %v364, %v757
        %v759 = vpop.f32.mrf.mxu0
        %v760 = vadd.f32 %v364, %v759
        %761 = vmatmul.bf16.gmra.mxu0 %v321
        %v762 = vpop.f32.mrf.mxu0
        %v763 = vadd.f32 %v364, %v762
        %v764 = vpop.f32.mrf.mxu0
        %v765 = vadd.f32 %v364, %v764
        %766 = vmatmul.bf16.gmra.mxu0 %v322
        %v767 = vpop.f32.mrf.mxu0
        %v768 = vadd.f32 %v364, %v767
        %v769 = vpop.f32.mrf.mxu0
        %v770 = vadd.f32 %v364, %v769
        %771 = vmatmul.bf16.gmra.mxu0 %v323
        %v772 = vpop.f32.mrf.mxu0
        %v773 = vadd.f32 %v364, %v772
        %v774 = vpop.f32.mrf.mxu0
        %v775 = vadd.f32 %v364, %v774
        %776 = vmatmul.bf16.gmra.mxu0 %v324
        %v777 = vpop.f32.mrf.mxu0
        %v778 = vadd.f32 %v364, %v777
        %v779 = vpop.f32.mrf.mxu0
        %v780 = vadd.f32 %v364, %v779
        %781 = vmatmul.bf16.gmra.mxu0 %v325
        %v782 = vpop.f32.mrf.mxu0
        %v783 = vadd.f32 %v364, %v782
        %v784 = vpop.f32.mrf.mxu0
        %v785 = vadd.f32 %v364, %v784
        %786 = vmatmul.bf16.gmra.mxu0 %v326
        %v787 = vpop.f32.mrf.mxu0
        %v788 = vadd.f32 %v364, %v787
        %v789 = vpop.f32.mrf.mxu0
        %v790 = vadd.f32 %v364, %v789
        %791 = vmatmul.bf16.gmra.mxu0 %v327
        %v792 = vpop.f32.mrf.mxu0
        %v793 = vadd.f32 %v364, %v792
        %v794 = vpop.f32.mrf.mxu0
        %v795 = vadd.f32 %v364, %v794
        %796 = vdwg.mxu0
        %797 = vmatpush.bf16.msra.mxu0 %v497
        %798 = vmatpush.bf16.msra.mxu0 %v493
        %799 = vmatpush.bf16.msra.mxu0 %v489
        %800 = vmatpush.bf16.msra.mxu0 %v485
        %801 = vmatpush.bf16.msra.mxu0 %v481
        %802 = vmatpush.bf16.msra.mxu0 %v477
        %803 = vmatpush.bf16.msra.mxu0 %v473
        %804 = vmatpush.bf16.msra.mxu0 %v469
        %805 = vmatmul.bf16.gmra.mxu0 %v312
        %v806 = vpop.f32.mrf.mxu0
        %v807 = vadd.f32 %v365, %v806
        %v808 = vpop.f32.mrf.mxu0
        %v809 = vadd.f32 %v365, %v808
        %810 = vmatmul.bf16.gmra.mxu0 %v313
        %v811 = vpop.f32.mrf.mxu0
        %v812 = vadd.f32 %v365, %v811
        %v813 = vpop.f32.mrf.mxu0
        %v814 = vadd.f32 %v365, %v813
        %815 = vmatmul.bf16.gmra.mxu0 %v314
        %v816 = vpop.f32.mrf.mxu0
        %v817 = vadd.f32 %v365, %v816
        %v818 = vpop.f32.mrf.mxu0
        %v819 = vadd.f32 %v365, %v818
        %820 = vmatmul.bf16.gmra.mxu0 %v315
        %v821 = vpop.f32.mrf.mxu0
        %v822 = vadd.f32 %v365, %v821
        %v823 = vpop.f32.mrf.mxu0
        %v824 = vadd.f32 %v365, %v823
        %825 = vmatmul.bf16.gmra.mxu0 %v316
        %v826 = vpop.f32.mrf.mxu0
        %v827 = vadd.f32 %v365, %v826
        %v828 = vpop.f32.mrf.mxu0
        %v829 = vadd.f32 %v365, %v828
        %830 = vmatmul.bf16.gmra.mxu0 %v317
        %v831 = vpop.f32.mrf.mxu0
        %v832 = vadd.f32 %v365, %v831
        %v833 = vpop.f32.mrf.mxu0
        %v834 = vadd.f32 %v365, %v833
        %835 = vmatmul.bf16.gmra.mxu0 %v318
        %v836 = vpop.f32.mrf.mxu0
        %v837 = vadd.f32 %v365, %v836
        %v838 = vpop.f32.mrf.mxu0
        %v839 = vadd.f32 %v365, %v838
        %840 = vmatmul.bf16.gmra.mxu0 %v319
        %v841 = vpop.f32.mrf.mxu0
        %v842 = vadd.f32 %v365, %v841
        %v843 = vpop.f32.mrf.mxu0
        %v844 = vadd.f32 %v365, %v843
        %845 = vmatmul.bf16.gmra.mxu0 %v320
        %v846 = vpop.f32.mrf.mxu0
        %v847 = vadd.f32 %v365, %v846
        %v848 = vpop.f32.mrf.mxu0
        %v849 = vadd.f32 %v365, %v848
        %850 = vmatmul.bf16.gmra.mxu0 %v321
        %v851 = vpop.f32.mrf.mxu0
        %v852 = vadd.f32 %v365, %v851
        %v853 = vpop.f32.mrf.mxu0
        %v854 = vadd.f32 %v365, %v853
        %855 = vmatmul.bf16.gmra.mxu0 %v322
        %v856 = vpop.f32.mrf.mxu0
        %v857 = vadd.f32 %v365, %v856
        %v858 = vpop.f32.mrf.mxu0
        %v859 = vadd.f32 %v365, %v858
        %860 = vmatmul.bf16.gmra.mxu0 %v323
        %v861 = vpop.f32.mrf.mxu0
        %v862 = vadd.f32 %v365, %v861
        %v863 = vpop.f32.mrf.mxu0
        %v864 = vadd.f32 %v365, %v863
        %865 = vmatmul.bf16.gmra.mxu0 %v324
        %v866 = vpop.f32.mrf.mxu0
        %v867 = vadd.f32 %v365, %v866
        %v868 = vpop.f32.mrf.mxu0
        %v869 = vadd.f32 %v365, %v868
        %870 = vmatmul.bf16.gmra.mxu0 %v325
        %v871 = vpop.f32.mrf.mxu0
        %v872 = vadd.f32 %v365, %v871
        %v873 = vpop.f32.mrf.mxu0
        %v874 = vadd.f32 %v365, %v873
        %875 = vmatmul.bf16.gmra.mxu0 %v326
        %v876 = vpop.f32.mrf.mxu0
        %v877 = vadd.f32 %v365, %v876
        %v878 = vpop.f32.mrf.mxu0
        %v879 = vadd.f32 %v365, %v878
        %880 = vmatmul.bf16.gmra.mxu0 %v327
        %v881 = vpop.f32.mrf.mxu0
        %v882 = vadd.f32 %v365, %v881
        %v883 = vpop.f32.mrf.mxu0
        %v884 = vadd.f32 %v365, %v883
        %885 = vdwg.mxu0
        %v886 = vmul.f32 %v540, 0.5
        %v887 = vmul.f32 %v629, 0.5
        %v888 = vmul.f32 %v718, 0.5
        %v889 = vmul.f32 %v807, 0.5
        %v890 = vmul.f32 %v542, 0.5
        %v891 = vmul.f32 %v631, 0.5
        %v892 = vmul.f32 %v720, 0.5
        %v893 = vmul.f32 %v809, 0.5
        %v894 = vmul.f32 %v545, 0.5
        %v895 = vmul.f32 %v634, 0.5
        %v896 = vmul.f32 %v723, 0.5
        %v897 = vmul.f32 %v812, 0.5
        %v898 = vmul.f32 %v547, 0.5
        %v899 = vmul.f32 %v636, 0.5
        %v900 = vmul.f32 %v725, 0.5
        %v901 = vmul.f32 %v814, 0.5
        %v902 = vmul.f32 %v550, 0.5
        %v903 = vmul.f32 %v639, 0.5
        %v904 = vmul.f32 %v728, 0.5
        %v905 = vmul.f32 %v817, 0.5
        %v906 = vmul.f32 %v552, 0.5
        %v907 = vmul.f32 %v641, 0.5
        %v908 = vmul.f32 %v730, 0.5
        %v909 = vmul.f32 %v819, 0.5
        %v910 = vmul.f32 %v555, 0.5
        %v911 = vmul.f32 %v644, 0.5
        %v912 = vmul.f32 %v733, 0.5
        %v913 = vmul.f32 %v822, 0.5
        %v914 = vmul.f32 %v557, 0.5
        %v915 = vmul.f32 %v646, 0.5
        %v916 = vmul.f32 %v735, 0.5
        %v917 = vmul.f32 %v824, 0.5
        %v918 = vmul.f32 %v560, 0.5
        %v919 = vmul.f32 %v649, 0.5
        %v920 = vmul.f32 %v738, 0.5
        %v921 = vmul.f32 %v827, 0.5
        %v922 = vmul.f32 %v562, 0.5
        %v923 = vmul.f32 %v651, 0.5
        %v924 = vmul.f32 %v740, 0.5
        %v925 = vmul.f32 %v829, 0.5
        %v926 = vmul.f32 %v565, 0.5
        %v927 = vmul.f32 %v654, 0.5
        %v928 = vmul.f32 %v743, 0.5
        %v929 = vmul.f32 %v832, 0.5
        %v930 = vmul.f32 %v567, 0.5
        %v931 = vmul.f32 %v656, 0.5
        %v932 = vmul.f32 %v745, 0.5
        %v933 = vmul.f32 %v834, 0.5
        %v934 = vmul.f32 %v570, 0.5
        %v935 = vmul.f32 %v659, 0.5
        %v936 = vmul.f32 %v748, 0.5
        %v937 = vmul.f32 %v837, 0.5
        %v938 = vmul.f32 %v572, 0.5
        %v939 = vmul.f32 %v661, 0.5
        %v940 = vmul.f32 %v750, 0.5
        %v941 = vmul.f32 %v839, 0.5
        %v942 = vmul.f32 %v575, 0.5
        %v943 = vmul.f32 %v664, 0.5
        %v944 = vmul.f32 %v753, 0.5
        %v945 = vmul.f32 %v842, 0.5
        %v946 = vmul.f32 %v577, 0.5
        %v947 = vmul.f32 %v666, 0.5
        %v948 = vmul.f32 %v755, 0.5
        %v949 = vmul.f32 %v844, 0.5
        %v950 = vmul.f32 %v580, 0.5
        %v951 = vmul.f32 %v669, 0.5
        %v952 = vmul.f32 %v758, 0.5
        %v953 = vmul.f32 %v847, 0.5
        %v954 = vmul.f32 %v582, 0.5
        %v955 = vmul.f32 %v671, 0.5
        %v956 = vmul.f32 %v760, 0.5
        %v957 = vmul.f32 %v849, 0.5
        %v958 = vmul.f32 %v585, 0.5
        %v959 = vmul.f32 %v674, 0.5
        %v960 = vmul.f32 %v763, 0.5
        %v961 = vmul.f32 %v852, 0.5
        %v962 = vmul.f32 %v587, 0.5
        %v963 = vmul.f32 %v676, 0.5
        %v964 = vmul.f32 %v765, 0.5
        %v965 = vmul.f32 %v854, 0.5
        %v966 = vmul.f32 %v590, 0.5
        %v967 = vmul.f32 %v679, 0.5
        %v968 = vmul.f32 %v768, 0.5
        %v969 = vmul.f32 %v857, 0.5
        %v970 = vmul.f32 %v592, 0.5
        %v971 = vmul.f32 %v681, 0.5
        %v972 = vmul.f32 %v770, 0.5
        %v973 = vmul.f32 %v859, 0.5
        %v974 = vmul.f32 %v595, 0.5
        %v975 = vmul.f32 %v684, 0.5
        %v976 = vmul.f32 %v773, 0.5
        %v977 = vmul.f32 %v862, 0.5
        %v978 = vmul.f32 %v597, 0.5
        %v979 = vmul.f32 %v686, 0.5
        %v980 = vmul.f32 %v775, 0.5
        %v981 = vmul.f32 %v864, 0.5
        %v982 = vmul.f32 %v600, 0.5
        %v983 = vmul.f32 %v689, 0.5
        %v984 = vmul.f32 %v778, 0.5
        %v985 = vmul.f32 %v867, 0.5
        %v986 = vmul.f32 %v602, 0.5
        %v987 = vmul.f32 %v691, 0.5
        %v988 = vmul.f32 %v780, 0.5
        %v989 = vmul.f32 %v869, 0.5
        %v990 = vmul.f32 %v605, 0.5
        %v991 = vmul.f32 %v694, 0.5
        %v992 = vmul.f32 %v783, 0.5
        %v993 = vmul.f32 %v872, 0.5
        %v994 = vmul.f32 %v607, 0.5
        %v995 = vmul.f32 %v696, 0.5
        %v996 = vmul.f32 %v785, 0.5
        %v997 = vmul.f32 %v874, 0.5
        %v998 = vmul.f32 %v610, 0.5
        %v999 = vmul.f32 %v699, 0.5
        %v1000 = vmul.f32 %v788, 0.5
        %v1001 = vmul.f32 %v877, 0.5
        %v1002 = vmul.f32 %v612, 0.5
        %v1003 = vmul.f32 %v701, 0.5
        %v1004 = vmul.f32 %v790, 0.5
        %v1005 = vmul.f32 %v879, 0.5
        %v1006 = vmul.f32 %v615, 0.5
        %v1007 = vmul.f32 %v704, 0.5
        %v1008 = vmul.f32 %v793, 0.5
        %v1009 = vmul.f32 %v882, 0.5
        %v1010 = vmul.f32 %v617, 0.5
        %v1011 = vmul.f32 %v706, 0.5
        %v1012 = vmul.f32 %v795, 0.5
        %v1013 = vmul.f32 %v884, 0.5
        %v1014 = vmul.f32 %v540, %v540
        %v1015 = vmul.f32 %v629, %v629
        %v1016 = vmul.f32 %v718, %v718
        %v1017 = vmul.f32 %v807, %v807
        %v1018 = vmul.f32 %v542, %v542
        %v1019 = vmul.f32 %v631, %v631
        %v1020 = vmul.f32 %v720, %v720
        %v1021 = vmul.f32 %v809, %v809
        %v1022 = vmul.f32 %v545, %v545
        %v1023 = vmul.f32 %v634, %v634
        %v1024 = vmul.f32 %v723, %v723
        %v1025 = vmul.f32 %v812, %v812
        %v1026 = vmul.f32 %v547, %v547
        %v1027 = vmul.f32 %v636, %v636
        %v1028 = vmul.f32 %v725, %v725
        %v1029 = vmul.f32 %v814, %v814
        %v1030 = vmul.f32 %v550, %v550
        %v1031 = vmul.f32 %v639, %v639
        %v1032 = vmul.f32 %v728, %v728
        %v1033 = vmul.f32 %v817, %v817
        %v1034 = vmul.f32 %v552, %v552
        %v1035 = vmul.f32 %v641, %v641
        %v1036 = vmul.f32 %v730, %v730
        %v1037 = vmul.f32 %v819, %v819
        %v1038 = vmul.f32 %v555, %v555
        %v1039 = vmul.f32 %v644, %v644
        %v1040 = vmul.f32 %v733, %v733
        %v1041 = vmul.f32 %v822, %v822
        %v1042 = vmul.f32 %v557, %v557
        %v1043 = vmul.f32 %v646, %v646
        %v1044 = vmul.f32 %v735, %v735
        %v1045 = vmul.f32 %v824, %v824
        %v1046 = vmul.f32 %v560, %v560
        %v1047 = vmul.f32 %v649, %v649
        %v1048 = vmul.f32 %v738, %v738
        %v1049 = vmul.f32 %v827, %v827
        %v1050 = vmul.f32 %v562, %v562
        %v1051 = vmul.f32 %v651, %v651
        %v1052 = vmul.f32 %v740, %v740
        %v1053 = vmul.f32 %v829, %v829
        %v1054 = vmul.f32 %v565, %v565
        %v1055 = vmul.f32 %v654, %v654
        %v1056 = vmul.f32 %v743, %v743
        %v1057 = vmul.f32 %v832, %v832
        %v1058 = vmul.f32 %v567, %v567
        %v1059 = vmul.f32 %v656, %v656
        %v1060 = vmul.f32 %v745, %v745
        %v1061 = vmul.f32 %v834, %v834
        %v1062 = vmul.f32 %v570, %v570
        %v1063 = vmul.f32 %v659, %v659
        %v1064 = vmul.f32 %v748, %v748
        %v1065 = vmul.f32 %v837, %v837
        %v1066 = vmul.f32 %v572, %v572
        %v1067 = vmul.f32 %v661, %v661
        %v1068 = vmul.f32 %v750, %v750
        %v1069 = vmul.f32 %v839, %v839
        %v1070 = vmul.f32 %v575, %v575
        %v1071 = vmul.f32 %v664, %v664
        %v1072 = vmul.f32 %v753, %v753
        %v1073 = vmul.f32 %v842, %v842
        %v1074 = vmul.f32 %v577, %v577
        %v1075 = vmul.f32 %v666, %v666
        %v1076 = vmul.f32 %v755, %v755
        %v1077 = vmul.f32 %v844, %v844
        %v1078 = vmul.f32 %v580, %v580
        %v1079 = vmul.f32 %v669, %v669
        %v1080 = vmul.f32 %v758, %v758
        %v1081 = vmul.f32 %v847, %v847
        %v1082 = vmul.f32 %v582, %v582
        %v1083 = vmul.f32 %v671, %v671
        %v1084 = vmul.f32 %v760, %v760
        %v1085 = vmul.f32 %v849, %v849
        %v1086 = vmul.f32 %v585, %v585
        %v1087 = vmul.f32 %v674, %v674
        %v1088 = vmul.f32 %v763, %v763
        %v1089 = vmul.f32 %v852, %v852
        %v1090 = vmul.f32 %v587, %v587
        %v1091 = vmul.f32 %v676, %v676
        %v1092 = vmul.f32 %v765, %v765
        %v1093 = vmul.f32 %v854, %v854
        %v1094 = vmul.f32 %v590, %v590
        %v1095 = vmul.f32 %v679, %v679
        %v1096 = vmul.f32 %v768, %v768
        %v1097 = vmul.f32 %v857, %v857
        %v1098 = vmul.f32 %v592, %v592
        %v1099 = vmul.f32 %v681, %v681
        %v1100 = vmul.f32 %v770, %v770
        %v1101 = vmul.f32 %v859, %v859
        %v1102 = vmul.f32 %v595, %v595
        %v1103 = vmul.f32 %v684, %v684
        %v1104 = vmul.f32 %v773, %v773
        %v1105 = vmul.f32 %v862, %v862
        %v1106 = vmul.f32 %v597, %v597
        %v1107 = vmul.f32 %v686, %v686
        %v1108 = vmul.f32 %v775, %v775
        %v1109 = vmul.f32 %v864, %v864
        %v1110 = vmul.f32 %v600, %v600
        %v1111 = vmul.f32 %v689, %v689
        %v1112 = vmul.f32 %v778, %v778
        %v1113 = vmul.f32 %v867, %v867
        %v1114 = vmul.f32 %v602, %v602
        %v1115 = vmul.f32 %v691, %v691
        %v1116 = vmul.f32 %v780, %v780
        %v1117 = vmul.f32 %v869, %v869
        %v1118 = vmul.f32 %v605, %v605
        %v1119 = vmul.f32 %v694, %v694
        %v1120 = vmul.f32 %v783, %v783
        %v1121 = vmul.f32 %v872, %v872
        %v1122 = vmul.f32 %v607, %v607
        %v1123 = vmul.f32 %v696, %v696
        %v1124 = vmul.f32 %v785, %v785
        %v1125 = vmul.f32 %v874, %v874
        %v1126 = vmul.f32 %v610, %v610
        %v1127 = vmul.f32 %v699, %v699
        %v1128 = vmul.f32 %v788, %v788
        %v1129 = vmul.f32 %v877, %v877
        %v1130 = vmul.f32 %v612, %v612
        %v1131 = vmul.f32 %v701, %v701
        %v1132 = vmul.f32 %v790, %v790
        %v1133 = vmul.f32 %v879, %v879
        %v1134 = vmul.f32 %v615, %v615
        %v1135 = vmul.f32 %v704, %v704
        %v1136 = vmul.f32 %v793, %v793
        %v1137 = vmul.f32 %v882, %v882
        %v1138 = vmul.f32 %v617, %v617
        %v1139 = vmul.f32 %v706, %v706
        %v1140 = vmul.f32 %v795, %v795
        %v1141 = vmul.f32 %v884, %v884
        %v1142 = vmul.f32 %v1014, %v540
        %v1143 = vmul.f32 %v1015, %v629
        %v1144 = vmul.f32 %v1016, %v718
        %v1145 = vmul.f32 %v1017, %v807
        %v1146 = vmul.f32 %v1018, %v542
        %v1147 = vmul.f32 %v1019, %v631
        %v1148 = vmul.f32 %v1020, %v720
        %v1149 = vmul.f32 %v1021, %v809
        %v1150 = vmul.f32 %v1022, %v545
        %v1151 = vmul.f32 %v1023, %v634
        %v1152 = vmul.f32 %v1024, %v723
        %v1153 = vmul.f32 %v1025, %v812
        %v1154 = vmul.f32 %v1026, %v547
        %v1155 = vmul.f32 %v1027, %v636
        %v1156 = vmul.f32 %v1028, %v725
        %v1157 = vmul.f32 %v1029, %v814
        %v1158 = vmul.f32 %v1030, %v550
        %v1159 = vmul.f32 %v1031, %v639
        %v1160 = vmul.f32 %v1032, %v728
        %v1161 = vmul.f32 %v1033, %v817
        %v1162 = vmul.f32 %v1034, %v552
        %v1163 = vmul.f32 %v1035, %v641
        %v1164 = vmul.f32 %v1036, %v730
        %v1165 = vmul.f32 %v1037, %v819
        %v1166 = vmul.f32 %v1038, %v555
        %v1167 = vmul.f32 %v1039, %v644
        %v1168 = vmul.f32 %v1040, %v733
        %v1169 = vmul.f32 %v1041, %v822
        %v1170 = vmul.f32 %v1042, %v557
        %v1171 = vmul.f32 %v1043, %v646
        %v1172 = vmul.f32 %v1044, %v735
        %v1173 = vmul.f32 %v1045, %v824
        %v1174 = vmul.f32 %v1046, %v560
        %v1175 = vmul.f32 %v1047, %v649
        %v1176 = vmul.f32 %v1048, %v738
        %v1177 = vmul.f32 %v1049, %v827
        %v1178 = vmul.f32 %v1050, %v562
        %v1179 = vmul.f32 %v1051, %v651
        %v1180 = vmul.f32 %v1052, %v740
        %v1181 = vmul.f32 %v1053, %v829
        %v1182 = vmul.f32 %v1054, %v565
        %v1183 = vmul.f32 %v1055, %v654
        %v1184 = vmul.f32 %v1056, %v743
        %v1185 = vmul.f32 %v1057, %v832
        %v1186 = vmul.f32 %v1058, %v567
        %v1187 = vmul.f32 %v1059, %v656
        %v1188 = vmul.f32 %v1060, %v745
        %v1189 = vmul.f32 %v1061, %v834
        %v1190 = vmul.f32 %v1062, %v570
        %v1191 = vmul.f32 %v1063, %v659
        %v1192 = vmul.f32 %v1064, %v748
        %v1193 = vmul.f32 %v1065, %v837
        %v1194 = vmul.f32 %v1066, %v572
        %v1195 = vmul.f32 %v1067, %v661
        %v1196 = vmul.f32 %v1068, %v750
        %v1197 = vmul.f32 %v1069, %v839
        %v1198 = vmul.f32 %v1070, %v575
        %v1199 = vmul.f32 %v1071, %v664
        %v1200 = vmul.f32 %v1072, %v753
        %v1201 = vmul.f32 %v1073, %v842
        %v1202 = vmul.f32 %v1074, %v577
        %v1203 = vmul.f32 %v1075, %v666
        %v1204 = vmul.f32 %v1076, %v755
        %v1205 = vmul.f32 %v1077, %v844
        %v1206 = vmul.f32 %v1078, %v580
        %v1207 = vmul.f32 %v1079, %v669
        %v1208 = vmul.f32 %v1080, %v758
        %v1209 = vmul.f32 %v1081, %v847
        %v1210 = vmul.f32 %v1082, %v582
        %v1211 = vmul.f32 %v1083, %v671
        %v1212 = vmul.f32 %v1084, %v760
        %v1213 = vmul.f32 %v1085, %v849
        %v1214 = vmul.f32 %v1086, %v585
        %v1215 = vmul.f32 %v1087, %v674
        %v1216 = vmul.f32 %v1088, %v763
        %v1217 = vmul.f32 %v1089, %v852
        %v1218 = vmul.f32 %v1090, %v587
        %v1219 = vmul.f32 %v1091, %v676
        %v1220 = vmul.f32 %v1092, %v765
        %v1221 = vmul.f32 %v1093, %v854
        %v1222 = vmul.f32 %v1094, %v590
        %v1223 = vmul.f32 %v1095, %v679
        %v1224 = vmul.f32 %v1096, %v768
        %v1225 = vmul.f32 %v1097, %v857
        %v1226 = vmul.f32 %v1098, %v592
        %v1227 = vmul.f32 %v1099, %v681
        %v1228 = vmul.f32 %v1100, %v770
        %v1229 = vmul.f32 %v1101, %v859
        %v1230 = vmul.f32 %v1102, %v595
        %v1231 = vmul.f32 %v1103, %v684
        %v1232 = vmul.f32 %v1104, %v773
        %v1233 = vmul.f32 %v1105, %v862
        %v1234 = vmul.f32 %v1106, %v597
        %v1235 = vmul.f32 %v1107, %v686
        %v1236 = vmul.f32 %v1108, %v775
        %v1237 = vmul.f32 %v1109, %v864
        %v1238 = vmul.f32 %v1110, %v600
        %v1239 = vmul.f32 %v1111, %v689
        %v1240 = vmul.f32 %v1112, %v778
        %v1241 = vmul.f32 %v1113, %v867
        %v1242 = vmul.f32 %v1114, %v602
        %v1243 = vmul.f32 %v1115, %v691
        %v1244 = vmul.f32 %v1116, %v780
        %v1245 = vmul.f32 %v1117, %v869
        %v1246 = vmul.f32 %v1118, %v605
        %v1247 = vmul.f32 %v1119, %v694
        %v1248 = vmul.f32 %v1120, %v783
        %v1249 = vmul.f32 %v1121, %v872
        %v1250 = vmul.f32 %v1122, %v607
        %v1251 = vmul.f32 %v1123, %v696
        %v1252 = vmul.f32 %v1124, %v785
        %v1253 = vmul.f32 %v1125, %v874
        %v1254 = vmul.f32 %v1126, %v610
        %v1255 = vmul.f32 %v1127, %v699
        %v1256 = vmul.f32 %v1128, %v788
        %v1257 = vmul.f32 %v1129, %v877
        %v1258 = vmul.f32 %v1130, %v612
        %v1259 = vmul.f32 %v1131, %v701
        %v1260 = vmul.f32 %v1132, %v790
        %v1261 = vmul.f32 %v1133, %v879
        %v1262 = vmul.f32 %v1134, %v615
        %v1263 = vmul.f32 %v1135, %v704
        %v1264 = vmul.f32 %v1136, %v793
        %v1265 = vmul.f32 %v1137, %v882
        %v1266 = vmul.f32 %v1138, %v617
        %v1267 = vmul.f32 %v1139, %v706
        %v1268 = vmul.f32 %v1140, %v795
        %v1269 = vmul.f32 %v1141, %v884
        %v1270 = vmul.f32 %v1142, 0.044715
        %v1271 = vmul.f32 %v1143, 0.044715
        %v1272 = vmul.f32 %v1144, 0.044715
        %v1273 = vmul.f32 %v1145, 0.044715
        %v1274 = vmul.f32 %v1146, 0.044715
        %v1275 = vmul.f32 %v1147, 0.044715
        %v1276 = vmul.f32 %v1148, 0.044715
        %v1277 = vmul.f32 %v1149, 0.044715
        %v1278 = vmul.f32 %v1150, 0.044715
        %v1279 = vmul.f32 %v1151, 0.044715
        %v1280 = vmul.f32 %v1152, 0.044715
        %v1281 = vmul.f32 %v1153, 0.044715
        %v1282 = vmul.f32 %v1154, 0.044715
        %v1283 = vmul.f32 %v1155, 0.044715
        %v1284 = vmul.f32 %v1156, 0.044715
        %v1285 = vmul.f32 %v1157, 0.044715
        %v1286 = vmul.f32 %v1158, 0.044715
        %v1287 = vmul.f32 %v1159, 0.044715
        %v1288 = vmul.f32 %v1160, 0.044715
        %v1289 = vmul.f32 %v1161, 0.044715
        %v1290 = vmul.f32 %v1162, 0.044715
        %v1291 = vmul.f32 %v1163, 0.044715
        %v1292 = vmul.f32 %v1164, 0.044715
        %v1293 = vmul.f32 %v1165, 0.044715
        %v1294 = vmul.f32 %v1166, 0.044715
        %v1295 = vmul.f32 %v1167, 0.044715
        %v1296 = vmul.f32 %v1168, 0.044715
        %v1297 = vmul.f32 %v1169, 0.044715
        %v1298 = vmul.f32 %v1170, 0.044715
        %v1299 = vmul.f32 %v1171, 0.044715
        %v1300 = vmul.f32 %v1172, 0.044715
        %v1301 = vmul.f32 %v1173, 0.044715
        %v1302 = vmul.f32 %v1174, 0.044715
        %v1303 = vmul.f32 %v1175, 0.044715
        %v1304 = vmul.f32 %v1176, 0.044715
        %v1305 = vmul.f32 %v1177, 0.044715
        %v1306 = vmul.f32 %v1178, 0.044715
        %v1307 = vmul.f32 %v1179, 0.044715
        %v1308 = vmul.f32 %v1180, 0.044715
        %v1309 = vmul.f32 %v1181, 0.044715
        %v1310 = vmul.f32 %v1182, 0.044715
        %v1311 = vmul.f32 %v1183, 0.044715
        %v1312 = vmul.f32 %v1184, 0.044715
        %v1313 = vmul.f32 %v1185, 0.044715
        %v1314 = vmul.f32 %v1186, 0.044715
        %v1315 = vmul.f32 %v1187, 0.044715
        %v1316 = vmul.f32 %v1188, 0.044715
        %v1317 = vmul.f32 %v1189, 0.044715
        %v1318 = vmul.f32 %v1190, 0.044715
        %v1319 = vmul.f32 %v1191, 0.044715
        %v1320 = vmul.f32 %v1192, 0.044715
        %v1321 = vmul.f32 %v1193, 0.044715
        %v1322 = vmul.f32 %v1194, 0.044715
        %v1323 = vmul.f32 %v1195, 0.044715
        %v1324 = vmul.f32 %v1196, 0.044715
        %v1325 = vmul.f32 %v1197, 0.044715
        %v1326 = vmul.f32 %v1198, 0.044715
        %v1327 = vmul.f32 %v1199, 0.044715
        %v1328 = vmul.f32 %v1200, 0.044715
        %v1329 = vmul.f32 %v1201, 0.044715
        %v1330 = vmul.f32 %v1202, 0.044715
        %v1331 = vmul.f32 %v1203, 0.044715
        %v1332 = vmul.f32 %v1204, 0.044715
        %v1333 = vmul.f32 %v1205, 0.044715
        %v1334 = vmul.f32 %v1206, 0.044715
        %v1335 = vmul.f32 %v1207, 0.044715
        %v1336 = vmul.f32 %v1208, 0.044715
        %v1337 = vmul.f32 %v1209, 0.044715
        %v1338 = vmul.f32 %v1210, 0.044715
        %v1339 = vmul.f32 %v1211, 0.044715
        %v1340 = vmul.f32 %v1212, 0.044715
        %v1341 = vmul.f32 %v1213, 0.044715
        %v1342 = vmul.f32 %v1214, 0.044715
        %v1343 = vmul.f32 %v1215, 0.044715
        %v1344 = vmul.f32 %v1216, 0.044715
        %v1345 = vmul.f32 %v1217, 0.044715
        %v1346 = vmul.f32 %v1218, 0.044715
        %v1347 = vmul.f32 %v1219, 0.044715
        %v1348 = vmul.f32 %v1220, 0.044715
        %v1349 = vmul.f32 %v1221, 0.044715
        %v1350 = vmul.f32 %v1222, 0.044715
        %v1351 = vmul.f32 %v1223, 0.044715
        %v1352 = vmul.f32 %v1224, 0.044715
        %v1353 = vmul.f32 %v1225, 0.044715
        %v1354 = vmul.f32 %v1226, 0.044715
        %v1355 = vmul.f32 %v1227, 0.044715
        %v1356 = vmul.f32 %v1228, 0.044715
        %v1357 = vmul.f32 %v1229, 0.044715
        %v1358 = vmul.f32 %v1230, 0.044715
        %v1359 = vmul.f32 %v1231, 0.044715
        %v1360 = vmul.f32 %v1232, 0.044715
        %v1361 = vmul.f32 %v1233, 0.044715
        %v1362 = vmul.f32 %v1234, 0.044715
        %v1363 = vmul.f32 %v1235, 0.044715
        %v1364 = vmul.f32 %v1236, 0.044715
        %v1365 = vmul.f32 %v1237, 0.044715
        %v1366 = vmul.f32 %v1238, 0.044715
        %v1367 = vmul.f32 %v1239, 0.044715
        %v1368 = vmul.f32 %v1240, 0.044715
        %v1369 = vmul.f32 %v1241, 0.044715
        %v1370 = vmul.f32 %v1242, 0.044715
        %v1371 = vmul.f32 %v1243, 0.044715
        %v1372 = vmul.f32 %v1244, 0.044715
        %v1373 = vmul.f32 %v1245, 0.044715
        %v1374 = vmul.f32 %v1246, 0.044715
        %v1375 = vmul.f32 %v1247, 0.044715
        %v1376 = vmul.f32 %v1248, 0.044715
        %v1377 = vmul.f32 %v1249, 0.044715
        %v1378 = vmul.f32 %v1250, 0.044715
        %v1379 = vmul.f32 %v1251, 0.044715
        %v1380 = vmul.f32 %v1252, 0.044715
        %v1381 = vmul.f32 %v1253, 0.044715
        %v1382 = vmul.f32 %v1254, 0.044715
        %v1383 = vmul.f32 %v1255, 0.044715
        %v1384 = vmul.f32 %v1256, 0.044715
        %v1385 = vmul.f32 %v1257, 0.044715
        %v1386 = vmul.f32 %v1258, 0.044715
        %v1387 = vmul.f32 %v1259, 0.044715
        %v1388 = vmul.f32 %v1260, 0.044715
        %v1389 = vmul.f32 %v1261, 0.044715
        %v1390 = vmul.f32 %v1262, 0.044715
        %v1391 = vmul.f32 %v1263, 0.044715
        %v1392 = vmul.f32 %v1264, 0.044715
        %v1393 = vmul.f32 %v1265, 0.044715
        %v1394 = vmul.f32 %v1266, 0.044715
        %v1395 = vmul.f32 %v1267, 0.044715
        %v1396 = vmul.f32 %v1268, 0.044715
        %v1397 = vmul.f32 %v1269, 0.044715
        %v1398 = vadd.f32 %v540, %v1270
        %v1399 = vadd.f32 %v629, %v1271
        %v1400 = vadd.f32 %v718, %v1272
        %v1401 = vadd.f32 %v807, %v1273
        %v1402 = vadd.f32 %v542, %v1274
        %v1403 = vadd.f32 %v631, %v1275
        %v1404 = vadd.f32 %v720, %v1276
        %v1405 = vadd.f32 %v809, %v1277
        %v1406 = vadd.f32 %v545, %v1278
        %v1407 = vadd.f32 %v634, %v1279
        %v1408 = vadd.f32 %v723, %v1280
        %v1409 = vadd.f32 %v812, %v1281
        %v1410 = vadd.f32 %v547, %v1282
        %v1411 = vadd.f32 %v636, %v1283
        %v1412 = vadd.f32 %v725, %v1284
        %v1413 = vadd.f32 %v814, %v1285
        %v1414 = vadd.f32 %v550, %v1286
        %v1415 = vadd.f32 %v639, %v1287
        %v1416 = vadd.f32 %v728, %v1288
        %v1417 = vadd.f32 %v817, %v1289
        %v1418 = vadd.f32 %v552, %v1290
        %v1419 = vadd.f32 %v641, %v1291
        %v1420 = vadd.f32 %v730, %v1292
        %v1421 = vadd.f32 %v819, %v1293
        %v1422 = vadd.f32 %v555, %v1294
        %v1423 = vadd.f32 %v644, %v1295
        %v1424 = vadd.f32 %v733, %v1296
        %v1425 = vadd.f32 %v822, %v1297
        %v1426 = vadd.f32 %v557, %v1298
        %v1427 = vadd.f32 %v646, %v1299
        %v1428 = vadd.f32 %v735, %v1300
        %v1429 = vadd.f32 %v824, %v1301
        %v1430 = vadd.f32 %v560, %v1302
        %v1431 = vadd.f32 %v649, %v1303
        %v1432 = vadd.f32 %v738, %v1304
        %v1433 = vadd.f32 %v827, %v1305
        %v1434 = vadd.f32 %v562, %v1306
        %v1435 = vadd.f32 %v651, %v1307
        %v1436 = vadd.f32 %v740, %v1308
        %v1437 = vadd.f32 %v829, %v1309
        %v1438 = vadd.f32 %v565, %v1310
        %v1439 = vadd.f32 %v654, %v1311
        %v1440 = vadd.f32 %v743, %v1312
        %v1441 = vadd.f32 %v832, %v1313
        %v1442 = vadd.f32 %v567, %v1314
        %v1443 = vadd.f32 %v656, %v1315
        %v1444 = vadd.f32 %v745, %v1316
        %v1445 = vadd.f32 %v834, %v1317
        %v1446 = vadd.f32 %v570, %v1318
        %v1447 = vadd.f32 %v659, %v1319
        %v1448 = vadd.f32 %v748, %v1320
        %v1449 = vadd.f32 %v837, %v1321
        %v1450 = vadd.f32 %v572, %v1322
        %v1451 = vadd.f32 %v661, %v1323
        %v1452 = vadd.f32 %v750, %v1324
        %v1453 = vadd.f32 %v839, %v1325
        %v1454 = vadd.f32 %v575, %v1326
        %v1455 = vadd.f32 %v664, %v1327
        %v1456 = vadd.f32 %v753, %v1328
        %v1457 = vadd.f32 %v842, %v1329
        %v1458 = vadd.f32 %v577, %v1330
        %v1459 = vadd.f32 %v666, %v1331
        %v1460 = vadd.f32 %v755, %v1332
        %v1461 = vadd.f32 %v844, %v1333
        %v1462 = vadd.f32 %v580, %v1334
        %v1463 = vadd.f32 %v669, %v1335
        %v1464 = vadd.f32 %v758, %v1336
        %v1465 = vadd.f32 %v847, %v1337
        %v1466 = vadd.f32 %v582, %v1338
        %v1467 = vadd.f32 %v671, %v1339
        %v1468 = vadd.f32 %v760, %v1340
        %v1469 = vadd.f32 %v849, %v1341
        %v1470 = vadd.f32 %v585, %v1342
        %v1471 = vadd.f32 %v674, %v1343
        %v1472 = vadd.f32 %v763, %v1344
        %v1473 = vadd.f32 %v852, %v1345
        %v1474 = vadd.f32 %v587, %v1346
        %v1475 = vadd.f32 %v676, %v1347
        %v1476 = vadd.f32 %v765, %v1348
        %v1477 = vadd.f32 %v854, %v1349
        %v1478 = vadd.f32 %v590, %v1350
        %v1479 = vadd.f32 %v679, %v1351
        %v1480 = vadd.f32 %v768, %v1352
        %v1481 = vadd.f32 %v857, %v1353
        %v1482 = vadd.f32 %v592, %v1354
        %v1483 = vadd.f32 %v681, %v1355
        %v1484 = vadd.f32 %v770, %v1356
        %v1485 = vadd.f32 %v859, %v1357
        %v1486 = vadd.f32 %v595, %v1358
        %v1487 = vadd.f32 %v684, %v1359
        %v1488 = vadd.f32 %v773, %v1360
        %v1489 = vadd.f32 %v862, %v1361
        %v1490 = vadd.f32 %v597, %v1362
        %v1491 = vadd.f32 %v686, %v1363
        %v1492 = vadd.f32 %v775, %v1364
        %v1493 = vadd.f32 %v864, %v1365
        %v1494 = vadd.f32 %v600, %v1366
        %v1495 = vadd.f32 %v689, %v1367
        %v1496 = vadd.f32 %v778, %v1368
        %v1497 = vadd.f32 %v867, %v1369
        %v1498 = vadd.f32 %v602, %v1370
        %v1499 = vadd.f32 %v691, %v1371
        %v1500 = vadd.f32 %v780, %v1372
        %v1501 = vadd.f32 %v869, %v1373
        %v1502 = vadd.f32 %v605, %v1374
        %v1503 = vadd.f32 %v694, %v1375
        %v1504 = vadd.f32 %v783, %v1376
        %v1505 = vadd.f32 %v872, %v1377
        %v1506 = vadd.f32 %v607, %v1378
        %v1507 = vadd.f32 %v696, %v1379
        %v1508 = vadd.f32 %v785, %v1380
        %v1509 = vadd.f32 %v874, %v1381
        %v1510 = vadd.f32 %v610, %v1382
        %v1511 = vadd.f32 %v699, %v1383
        %v1512 = vadd.f32 %v788, %v1384
        %v1513 = vadd.f32 %v877, %v1385
        %v1514 = vadd.f32 %v612, %v1386
        %v1515 = vadd.f32 %v701, %v1387
        %v1516 = vadd.f32 %v790, %v1388
        %v1517 = vadd.f32 %v879, %v1389
        %v1518 = vadd.f32 %v615, %v1390
        %v1519 = vadd.f32 %v704, %v1391
        %v1520 = vadd.f32 %v793, %v1392
        %v1521 = vadd.f32 %v882, %v1393
        %v1522 = vadd.f32 %v617, %v1394
        %v1523 = vadd.f32 %v706, %v1395
        %v1524 = vadd.f32 %v795, %v1396
        %v1525 = vadd.f32 %v884, %v1397
        %v1526 = vmul.f32 %v1398, 0.7978846
        %v1527 = vmul.f32 %v1399, 0.7978846
        %v1528 = vmul.f32 %v1400, 0.7978846
        %v1529 = vmul.f32 %v1401, 0.7978846
        %v1530 = vmul.f32 %v1402, 0.7978846
        %v1531 = vmul.f32 %v1403, 0.7978846
        %v1532 = vmul.f32 %v1404, 0.7978846
        %v1533 = vmul.f32 %v1405, 0.7978846
        %v1534 = vmul.f32 %v1406, 0.7978846
        %v1535 = vmul.f32 %v1407, 0.7978846
        %v1536 = vmul.f32 %v1408, 0.7978846
        %v1537 = vmul.f32 %v1409, 0.7978846
        %v1538 = vmul.f32 %v1410, 0.7978846
        %v1539 = vmul.f32 %v1411, 0.7978846
        %v1540 = vmul.f32 %v1412, 0.7978846
        %v1541 = vmul.f32 %v1413, 0.7978846
        %v1542 = vmul.f32 %v1414, 0.7978846
        %v1543 = vmul.f32 %v1415, 0.7978846
        %v1544 = vmul.f32 %v1416, 0.7978846
        %v1545 = vmul.f32 %v1417, 0.7978846
        %v1546 = vmul.f32 %v1418, 0.7978846
        %v1547 = vmul.f32 %v1419, 0.7978846
        %v1548 = vmul.f32 %v1420, 0.7978846
        %v1549 = vmul.f32 %v1421, 0.7978846
        %v1550 = vmul.f32 %v1422, 0.7978846
        %v1551 = vmul.f32 %v1423, 0.7978846
        %v1552 = vmul.f32 %v1424, 0.7978846
        %v1553 = vmul.f32 %v1425, 0.7978846
        %v1554 = vmul.f32 %v1426, 0.7978846
        %v1555 = vmul.f32 %v1427, 0.7978846
        %v1556 = vmul.f32 %v1428, 0.7978846
        %v1557 = vmul.f32 %v1429, 0.7978846
        %v1558 = vmul.f32 %v1430, 0.7978846
        %v1559 = vmul.f32 %v1431, 0.7978846
        %v1560 = vmul.f32 %v1432, 0.7978846
        %v1561 = vmul.f32 %v1433, 0.7978846
        %v1562 = vmul.f32 %v1434, 0.7978846
        %v1563 = vmul.f32 %v1435, 0.7978846
        %v1564 = vmul.f32 %v1436, 0.7978846
        %v1565 = vmul.f32 %v1437, 0.7978846
        %v1566 = vmul.f32 %v1438, 0.7978846
        %v1567 = vmul.f32 %v1439, 0.7978846
        %v1568 = vmul.f32 %v1440, 0.7978846
        %v1569 = vmul.f32 %v1441, 0.7978846
        %v1570 = vmul.f32 %v1442, 0.7978846
        %v1571 = vmul.f32 %v1443, 0.7978846
        %v1572 = vmul.f32 %v1444, 0.7978846
        %v1573 = vmul.f32 %v1445, 0.7978846
        %v1574 = vmul.f32 %v1446, 0.7978846
        %v1575 = vmul.f32 %v1447, 0.7978846
        %v1576 = vmul.f32 %v1448, 0.7978846
        %v1577 = vmul.f32 %v1449, 0.7978846
        %v1578 = vmul.f32 %v1450, 0.7978846
        %v1579 = vmul.f32 %v1451, 0.7978846
        %v1580 = vmul.f32 %v1452, 0.7978846
        %v1581 = vmul.f32 %v1453, 0.7978846
        %v1582 = vmul.f32 %v1454, 0.7978846
        %v1583 = vmul.f32 %v1455, 0.7978846
        %v1584 = vmul.f32 %v1456, 0.7978846
        %v1585 = vmul.f32 %v1457, 0.7978846
        %v1586 = vmul.f32 %v1458, 0.7978846
        %v1587 = vmul.f32 %v1459, 0.7978846
        %v1588 = vmul.f32 %v1460, 0.7978846
        %v1589 = vmul.f32 %v1461, 0.7978846
        %v1590 = vmul.f32 %v1462, 0.7978846
        %v1591 = vmul.f32 %v1463, 0.7978846
        %v1592 = vmul.f32 %v1464, 0.7978846
        %v1593 = vmul.f32 %v1465, 0.7978846
        %v1594 = vmul.f32 %v1466, 0.7978846
        %v1595 = vmul.f32 %v1467, 0.7978846
        %v1596 = vmul.f32 %v1468, 0.7978846
        %v1597 = vmul.f32 %v1469, 0.7978846
        %v1598 = vmul.f32 %v1470, 0.7978846
        %v1599 = vmul.f32 %v1471, 0.7978846
        %v1600 = vmul.f32 %v1472, 0.7978846
        %v1601 = vmul.f32 %v1473, 0.7978846
        %v1602 = vmul.f32 %v1474, 0.7978846
        %v1603 = vmul.f32 %v1475, 0.7978846
        %v1604 = vmul.f32 %v1476, 0.7978846
        %v1605 = vmul.f32 %v1477, 0.7978846
        %v1606 = vmul.f32 %v1478, 0.7978846
        %v1607 = vmul.f32 %v1479, 0.7978846
        %v1608 = vmul.f32 %v1480, 0.7978846
        %v1609 = vmul.f32 %v1481, 0.7978846
        %v1610 = vmul.f32 %v1482, 0.7978846
        %v1611 = vmul.f32 %v1483, 0.7978846
        %v1612 = vmul.f32 %v1484, 0.7978846
        %v1613 = vmul.f32 %v1485, 0.7978846
        %v1614 = vmul.f32 %v1486, 0.7978846
        %v1615 = vmul.f32 %v1487, 0.7978846
        %v1616 = vmul.f32 %v1488, 0.7978846
        %v1617 = vmul.f32 %v1489, 0.7978846
        %v1618 = vmul.f32 %v1490, 0.7978846
        %v1619 = vmul.f32 %v1491, 0.7978846
        %v1620 = vmul.f32 %v1492, 0.7978846
        %v1621 = vmul.f32 %v1493, 0.7978846
        %v1622 = vmul.f32 %v1494, 0.7978846
        %v1623 = vmul.f32 %v1495, 0.7978846
        %v1624 = vmul.f32 %v1496, 0.7978846
        %v1625 = vmul.f32 %v1497, 0.7978846
        %v1626 = vmul.f32 %v1498, 0.7978846
        %v1627 = vmul.f32 %v1499, 0.7978846
        %v1628 = vmul.f32 %v1500, 0.7978846
        %v1629 = vmul.f32 %v1501, 0.7978846
        %v1630 = vmul.f32 %v1502, 0.7978846
        %v1631 = vmul.f32 %v1503, 0.7978846
        %v1632 = vmul.f32 %v1504, 0.7978846
        %v1633 = vmul.f32 %v1505, 0.7978846
        %v1634 = vmul.f32 %v1506, 0.7978846
        %v1635 = vmul.f32 %v1507, 0.7978846
        %v1636 = vmul.f32 %v1508, 0.7978846
        %v1637 = vmul.f32 %v1509, 0.7978846
        %v1638 = vmul.f32 %v1510, 0.7978846
        %v1639 = vmul.f32 %v1511, 0.7978846
        %v1640 = vmul.f32 %v1512, 0.7978846
        %v1641 = vmul.f32 %v1513, 0.7978846
        %v1642 = vmul.f32 %v1514, 0.7978846
        %v1643 = vmul.f32 %v1515, 0.7978846
        %v1644 = vmul.f32 %v1516, 0.7978846
        %v1645 = vmul.f32 %v1517, 0.7978846
        %v1646 = vmul.f32 %v1518, 0.7978846
        %v1647 = vmul.f32 %v1519, 0.7978846
        %v1648 = vmul.f32 %v1520, 0.7978846
        %v1649 = vmul.f32 %v1521, 0.7978846
        %v1650 = vmul.f32 %v1522, 0.7978846
        %v1651 = vmul.f32 %v1523, 0.7978846
        %v1652 = vmul.f32 %v1524, 0.7978846
        %v1653 = vmul.f32 %v1525, 0.7978846
        %v1654 = vtanh.pop %v1526
        %v1655 = vtanh.pop %v1527
        %v1656 = vtanh.pop %v1528
        %v1657 = vtanh.pop %v1529
        %v1658 = vtanh.pop %v1530
        %v1659 = vtanh.pop %v1531
        %v1660 = vtanh.pop %v1532
        %v1661 = vtanh.pop %v1533
        %v1662 = vtanh.pop %v1534
        %v1663 = vtanh.pop %v1535
        %v1664 = vtanh.pop %v1536
        %v1665 = vtanh.pop %v1537
        %v1666 = vtanh.pop %v1538
        %v1667 = vtanh.pop %v1539
        %v1668 = vtanh.pop %v1540
        %v1669 = vtanh.pop %v1541
        %v1670 = vtanh.pop %v1542
        %v1671 = vtanh.pop %v1543
        %v1672 = vtanh.pop %v1544
        %v1673 = vtanh.pop %v1545
        %v1674 = vtanh.pop %v1546
        %v1675 = vtanh.pop %v1547
        %v1676 = vtanh.pop %v1548
        %v1677 = vtanh.pop %v1549
        %v1678 = vtanh.pop %v1550
        %v1679 = vtanh.pop %v1551
        %v1680 = vtanh.pop %v1552
        %v1681 = vtanh.pop %v1553
        %v1682 = vtanh.pop %v1554
        %v1683 = vtanh.pop %v1555
        %v1684 = vtanh.pop %v1556
        %v1685 = vtanh.pop %v1557
        %v1686 = vtanh.pop %v1558
        %v1687 = vtanh.pop %v1559
        %v1688 = vtanh.pop %v1560
        %v1689 = vtanh.pop %v1561
        %v1690 = vtanh.pop %v1562
        %v1691 = vtanh.pop %v1563
        %v1692 = vtanh.pop %v1564
        %v1693 = vtanh.pop %v1565
        %v1694 = vtanh.pop %v1566
        %v1695 = vtanh.pop %v1567
        %v1696 = vtanh.pop %v1568
        %v1697 = vtanh.pop %v1569
        %v1698 = vtanh.pop %v1570
        %v1699 = vtanh.pop %v1571
        %v1700 = vtanh.pop %v1572
        %v1701 = vtanh.pop %v1573
        %v1702 = vtanh.pop %v1574
        %v1703 = vtanh.pop %v1575
        %v1704 = vtanh.pop %v1576
        %v1705 = vtanh.pop %v1577
        %v1706 = vtanh.pop %v1578
        %v1707 = vtanh.pop %v1579
        %v1708 = vtanh.pop %v1580
        %v1709 = vtanh.pop %v1581
        %v1710 = vtanh.pop %v1582
        %v1711 = vtanh.pop %v1583
        %v1712 = vtanh.pop %v1584
        %v1713 = vtanh.pop %v1585
        %v1714 = vtanh.pop %v1586
        %v1715 = vtanh.pop %v1587
        %v1716 = vtanh.pop %v1588
        %v1717 = vtanh.pop %v1589
        %v1718 = vtanh.pop %v1590
        %v1719 = vtanh.pop %v1591
        %v1720 = vtanh.pop %v1592
        %v1721 = vtanh.pop %v1593
        %v1722 = vtanh.pop %v1594
        %v1723 = vtanh.pop %v1595
        %v1724 = vtanh.pop %v1596
        %v1725 = vtanh.pop %v1597
        %v1726 = vtanh.pop %v1598
        %v1727 = vtanh.pop %v1599
        %v1728 = vtanh.pop %v1600
        %v1729 = vtanh.pop %v1601
        %v1730 = vtanh.pop %v1602
        %v1731 = vtanh.pop %v1603
        %v1732 = vtanh.pop %v1604
        %v1733 = vtanh.pop %v1605
        %v1734 = vtanh.pop %v1606
        %v1735 = vtanh.pop %v1607
        %v1736 = vtanh.pop %v1608
        %v1737 = vtanh.pop %v1609
        %v1738 = vtanh.pop %v1610
        %v1739 = vtanh.pop %v1611
        %v1740 = vtanh.pop %v1612
        %v1741 = vtanh.pop %v1613
        %v1742 = vtanh.pop %v1614
        %v1743 = vtanh.pop %v1615
        %v1744 = vtanh.pop %v1616
        %v1745 = vtanh.pop %v1617
        %v1746 = vtanh.pop %v1618
        %v1747 = vtanh.pop %v1619
        %v1748 = vtanh.pop %v1620
        %v1749 = vtanh.pop %v1621
        %v1750 = vtanh.pop %v1622
        %v1751 = vtanh.pop %v1623
        %v1752 = vtanh.pop %v1624
        %v1753 = vtanh.pop %v1625
        %v1754 = vtanh.pop %v1626
        %v1755 = vtanh.pop %v1627
        %v1756 = vtanh.pop %v1628
        %v1757 = vtanh.pop %v1629
        %v1758 = vtanh.pop %v1630
        %v1759 = vtanh.pop %v1631
        %v1760 = vtanh.pop %v1632
        %v1761 = vtanh.pop %v1633
        %v1762 = vtanh.pop %v1634
        %v1763 = vtanh.pop %v1635
        %v1764 = vtanh.pop %v1636
        %v1765 = vtanh.pop %v1637
        %v1766 = vtanh.pop %v1638
        %v1767 = vtanh.pop %v1639
        %v1768 = vtanh.pop %v1640
        %v1769 = vtanh.pop %v1641
        %v1770 = vtanh.pop %v1642
        %v1771 = vtanh.pop %v1643
        %v1772 = vtanh.pop %v1644
        %v1773 = vtanh.pop %v1645
        %v1774 = vtanh.pop %v1646
        %v1775 = vtanh.pop %v1647
        %v1776 = vtanh.pop %v1648
        %v1777 = vtanh.pop %v1649
        %v1778 = vtanh.pop %v1650
        %v1779 = vtanh.pop %v1651
        %v1780 = vtanh.pop %v1652
        %v1781 = vtanh.pop %v1653
        %v1782 = vadd.f32 %v1654, 1.0
        %v1783 = vadd.f32 %v1655, 1.0
        %v1784 = vadd.f32 %v1656, 1.0
        %v1785 = vadd.f32 %v1657, 1.0
        %v1786 = vadd.f32 %v1658, 1.0
        %v1787 = vadd.f32 %v1659, 1.0
        %v1788 = vadd.f32 %v1660, 1.0
        %v1789 = vadd.f32 %v1661, 1.0
        %v1790 = vadd.f32 %v1662, 1.0
        %v1791 = vadd.f32 %v1663, 1.0
        %v1792 = vadd.f32 %v1664, 1.0
        %v1793 = vadd.f32 %v1665, 1.0
        %v1794 = vadd.f32 %v1666, 1.0
        %v1795 = vadd.f32 %v1667, 1.0
        %v1796 = vadd.f32 %v1668, 1.0
        %v1797 = vadd.f32 %v1669, 1.0
        %v1798 = vadd.f32 %v1670, 1.0
        %v1799 = vadd.f32 %v1671, 1.0
        %v1800 = vadd.f32 %v1672, 1.0
        %v1801 = vadd.f32 %v1673, 1.0
        %v1802 = vadd.f32 %v1674, 1.0
        %v1803 = vadd.f32 %v1675, 1.0
        %v1804 = vadd.f32 %v1676, 1.0
        %v1805 = vadd.f32 %v1677, 1.0
        %v1806 = vadd.f32 %v1678, 1.0
        %v1807 = vadd.f32 %v1679, 1.0
        %v1808 = vadd.f32 %v1680, 1.0
        %v1809 = vadd.f32 %v1681, 1.0
        %v1810 = vadd.f32 %v1682, 1.0
        %v1811 = vadd.f32 %v1683, 1.0
        %v1812 = vadd.f32 %v1684, 1.0
        %v1813 = vadd.f32 %v1685, 1.0
        %v1814 = vadd.f32 %v1686, 1.0
        %v1815 = vadd.f32 %v1687, 1.0
        %v1816 = vadd.f32 %v1688, 1.0
        %v1817 = vadd.f32 %v1689, 1.0
        %v1818 = vadd.f32 %v1690, 1.0
        %v1819 = vadd.f32 %v1691, 1.0
        %v1820 = vadd.f32 %v1692, 1.0
        %v1821 = vadd.f32 %v1693, 1.0
        %v1822 = vadd.f32 %v1694, 1.0
        %v1823 = vadd.f32 %v1695, 1.0
        %v1824 = vadd.f32 %v1696, 1.0
        %v1825 = vadd.f32 %v1697, 1.0
        %v1826 = vadd.f32 %v1698, 1.0
        %v1827 = vadd.f32 %v1699, 1.0
        %v1828 = vadd.f32 %v1700, 1.0
        %v1829 = vadd.f32 %v1701, 1.0
        %v1830 = vadd.f32 %v1702, 1.0
        %v1831 = vadd.f32 %v1703, 1.0
        %v1832 = vadd.f32 %v1704, 1.0
        %v1833 = vadd.f32 %v1705, 1.0
        %v1834 = vadd.f32 %v1706, 1.0
        %v1835 = vadd.f32 %v1707, 1.0
        %v1836 = vadd.f32 %v1708, 1.0
        %v1837 = vadd.f32 %v1709, 1.0
        %v1838 = vadd.f32 %v1710, 1.0
        %v1839 = vadd.f32 %v1711, 1.0
        %v1840 = vadd.f32 %v1712, 1.0
        %v1841 = vadd.f32 %v1713, 1.0
        %v1842 = vadd.f32 %v1714, 1.0
        %v1843 = vadd.f32 %v1715, 1.0
        %v1844 = vadd.f32 %v1716, 1.0
        %v1845 = vadd.f32 %v1717, 1.0
        %v1846 = vadd.f32 %v1718, 1.0
        %v1847 = vadd.f32 %v1719, 1.0
        %v1848 = vadd.f32 %v1720, 1.0
        %v1849 = vadd.f32 %v1721, 1.0
        %v1850 = vadd.f32 %v1722, 1.0
        %v1851 = vadd.f32 %v1723, 1.0
        %v1852 = vadd.f32 %v1724, 1.0
        %v1853 = vadd.f32 %v1725, 1.0
        %v1854 = vadd.f32 %v1726, 1.0
        %v1855 = vadd.f32 %v1727, 1.0
        %v1856 = vadd.f32 %v1728, 1.0
        %v1857 = vadd.f32 %v1729, 1.0
        %v1858 = vadd.f32 %v1730, 1.0
        %v1859 = vadd.f32 %v1731, 1.0
        %v1860 = vadd.f32 %v1732, 1.0
        %v1861 = vadd.f32 %v1733, 1.0
        %v1862 = vadd.f32 %v1734, 1.0
        %v1863 = vadd.f32 %v1735, 1.0
        %v1864 = vadd.f32 %v1736, 1.0
        %v1865 = vadd.f32 %v1737, 1.0
        %v1866 = vadd.f32 %v1738, 1.0
        %v1867 = vadd.f32 %v1739, 1.0
        %v1868 = vadd.f32 %v1740, 1.0
        %v1869 = vadd.f32 %v1741, 1.0
        %v1870 = vadd.f32 %v1742, 1.0
        %v1871 = vadd.f32 %v1743, 1.0
        %v1872 = vadd.f32 %v1744, 1.0
        %v1873 = vadd.f32 %v1745, 1.0
        %v1874 = vadd.f32 %v1746, 1.0
        %v1875 = vadd.f32 %v1747, 1.0
        %v1876 = vadd.f32 %v1748, 1.0
        %v1877 = vadd.f32 %v1749, 1.0
        %v1878 = vadd.f32 %v1750, 1.0
        %v1879 = vadd.f32 %v1751, 1.0
        %v1880 = vadd.f32 %v1752, 1.0
        %v1881 = vadd.f32 %v1753, 1.0
        %v1882 = vadd.f32 %v1754, 1.0
        %v1883 = vadd.f32 %v1755, 1.0
        %v1884 = vadd.f32 %v1756, 1.0
        %v1885 = vadd.f32 %v1757, 1.0
        %v1886 = vadd.f32 %v1758, 1.0
        %v1887 = vadd.f32 %v1759, 1.0
        %v1888 = vadd.f32 %v1760, 1.0
        %v1889 = vadd.f32 %v1761, 1.0
        %v1890 = vadd.f32 %v1762, 1.0
        %v1891 = vadd.f32 %v1763, 1.0
        %v1892 = vadd.f32 %v1764, 1.0
        %v1893 = vadd.f32 %v1765, 1.0
        %v1894 = vadd.f32 %v1766, 1.0
        %v1895 = vadd.f32 %v1767, 1.0
        %v1896 = vadd.f32 %v1768, 1.0
        %v1897 = vadd.f32 %v1769, 1.0
        %v1898 = vadd.f32 %v1770, 1.0
        %v1899 = vadd.f32 %v1771, 1.0
        %v1900 = vadd.f32 %v1772, 1.0
        %v1901 = vadd.f32 %v1773, 1.0
        %v1902 = vadd.f32 %v1774, 1.0
        %v1903 = vadd.f32 %v1775, 1.0
        %v1904 = vadd.f32 %v1776, 1.0
        %v1905 = vadd.f32 %v1777, 1.0
        %v1906 = vadd.f32 %v1778, 1.0
        %v1907 = vadd.f32 %v1779, 1.0
        %v1908 = vadd.f32 %v1780, 1.0
        %v1909 = vadd.f32 %v1781, 1.0
        %v1910 = vmul.f32 %v886, %v1782
        %v1911 = vmul.f32 %v887, %v1783
        %v1912 = vmul.f32 %v888, %v1784
        %v1913 = vmul.f32 %v889, %v1785
        %v1914 = vmul.f32 %v890, %v1786
        %v1915 = vmul.f32 %v891, %v1787
        %v1916 = vmul.f32 %v892, %v1788
        %v1917 = vmul.f32 %v893, %v1789
        %v1918 = vmul.f32 %v894, %v1790
        %v1919 = vmul.f32 %v895, %v1791
        %v1920 = vmul.f32 %v896, %v1792
        %v1921 = vmul.f32 %v897, %v1793
        %v1922 = vmul.f32 %v898, %v1794
        %v1923 = vmul.f32 %v899, %v1795
        %v1924 = vmul.f32 %v900, %v1796
        %v1925 = vmul.f32 %v901, %v1797
        %v1926 = vmul.f32 %v902, %v1798
        %v1927 = vmul.f32 %v903, %v1799
        %v1928 = vmul.f32 %v904, %v1800
        %v1929 = vmul.f32 %v905, %v1801
        %v1930 = vmul.f32 %v906, %v1802
        %v1931 = vmul.f32 %v907, %v1803
        %v1932 = vmul.f32 %v908, %v1804
        %v1933 = vmul.f32 %v909, %v1805
        %v1934 = vmul.f32 %v910, %v1806
        %v1935 = vmul.f32 %v911, %v1807
        %v1936 = vmul.f32 %v912, %v1808
        %v1937 = vmul.f32 %v913, %v1809
        %v1938 = vmul.f32 %v914, %v1810
        %v1939 = vmul.f32 %v915, %v1811
        %v1940 = vmul.f32 %v916, %v1812
        %v1941 = vmul.f32 %v917, %v1813
        %v1942 = vmul.f32 %v918, %v1814
        %v1943 = vmul.f32 %v919, %v1815
        %v1944 = vmul.f32 %v920, %v1816
        %v1945 = vmul.f32 %v921, %v1817
        %v1946 = vmul.f32 %v922, %v1818
        %v1947 = vmul.f32 %v923, %v1819
        %v1948 = vmul.f32 %v924, %v1820
        %v1949 = vmul.f32 %v925, %v1821
        %v1950 = vmul.f32 %v926, %v1822
        %v1951 = vmul.f32 %v927, %v1823
        %v1952 = vmul.f32 %v928, %v1824
        %v1953 = vmul.f32 %v929, %v1825
        %v1954 = vmul.f32 %v930, %v1826
        %v1955 = vmul.f32 %v931, %v1827
        %v1956 = vmul.f32 %v932, %v1828
        %v1957 = vmul.f32 %v933, %v1829
        %v1958 = vmul.f32 %v934, %v1830
        %v1959 = vmul.f32 %v935, %v1831
        %v1960 = vmul.f32 %v936, %v1832
        %v1961 = vmul.f32 %v937, %v1833
        %v1962 = vmul.f32 %v938, %v1834
        %v1963 = vmul.f32 %v939, %v1835
        %v1964 = vmul.f32 %v940, %v1836
        %v1965 = vmul.f32 %v941, %v1837
        %v1966 = vmul.f32 %v942, %v1838
        %v1967 = vmul.f32 %v943, %v1839
        %v1968 = vmul.f32 %v944, %v1840
        %v1969 = vmul.f32 %v945, %v1841
        %v1970 = vmul.f32 %v946, %v1842
        %v1971 = vmul.f32 %v947, %v1843
        %v1972 = vmul.f32 %v948, %v1844
        %v1973 = vmul.f32 %v949, %v1845
        %v1974 = vmul.f32 %v950, %v1846
        %v1975 = vmul.f32 %v951, %v1847
        %v1976 = vmul.f32 %v952, %v1848
        %v1977 = vmul.f32 %v953, %v1849
        %v1978 = vmul.f32 %v954, %v1850
        %v1979 = vmul.f32 %v955, %v1851
        %v1980 = vmul.f32 %v956, %v1852
        %v1981 = vmul.f32 %v957, %v1853
        %v1982 = vmul.f32 %v958, %v1854
        %v1983 = vmul.f32 %v959, %v1855
        %v1984 = vmul.f32 %v960, %v1856
        %v1985 = vmul.f32 %v961, %v1857
        %v1986 = vmul.f32 %v962, %v1858
        %v1987 = vmul.f32 %v963, %v1859
        %v1988 = vmul.f32 %v964, %v1860
        %v1989 = vmul.f32 %v965, %v1861
        %v1990 = vmul.f32 %v966, %v1862
        %v1991 = vmul.f32 %v967, %v1863
        %v1992 = vmul.f32 %v968, %v1864
        %v1993 = vmul.f32 %v969, %v1865
        %v1994 = vmul.f32 %v970, %v1866
        %v1995 = vmul.f32 %v971, %v1867
        %v1996 = vmul.f32 %v972, %v1868
        %v1997 = vmul.f32 %v973, %v1869
        %v1998 = vmul.f32 %v974, %v1870
        %v1999 = vmul.f32 %v975, %v1871
        %v2000 = vmul.f32 %v976, %v1872
        %v2001 = vmul.f32 %v977, %v1873
        %v2002 = vmul.f32 %v978, %v1874
        %v2003 = vmul.f32 %v979, %v1875
        %v2004 = vmul.f32 %v980, %v1876
        %v2005 = vmul.f32 %v981, %v1877
        %v2006 = vmul.f32 %v982, %v1878
        %v2007 = vmul.f32 %v983, %v1879
        %v2008 = vmul.f32 %v984, %v1880
        %v2009 = vmul.f32 %v985, %v1881
        %v2010 = vmul.f32 %v986, %v1882
        %v2011 = vmul.f32 %v987, %v1883
        %v2012 = vmul.f32 %v988, %v1884
        %v2013 = vmul.f32 %v989, %v1885
        %v2014 = vmul.f32 %v990, %v1886
        %v2015 = vmul.f32 %v991, %v1887
        %v2016 = vmul.f32 %v992, %v1888
        %v2017 = vmul.f32 %v993, %v1889
        %v2018 = vmul.f32 %v994, %v1890
        %v2019 = vmul.f32 %v995, %v1891
        %v2020 = vmul.f32 %v996, %v1892
        %v2021 = vmul.f32 %v997, %v1893
        %v2022 = vmul.f32 %v998, %v1894
        %v2023 = vmul.f32 %v999, %v1895
        %v2024 = vmul.f32 %v1000, %v1896
        %v2025 = vmul.f32 %v1001, %v1897
        %v2026 = vmul.f32 %v1002, %v1898
        %v2027 = vmul.f32 %v1003, %v1899
        %v2028 = vmul.f32 %v1004, %v1900
        %v2029 = vmul.f32 %v1005, %v1901
        %v2030 = vmul.f32 %v1006, %v1902
        %v2031 = vmul.f32 %v1007, %v1903
        %v2032 = vmul.f32 %v1008, %v1904
        %v2033 = vmul.f32 %v1009, %v1905
        %v2034 = vmul.f32 %v1010, %v1906
        %v2035 = vmul.f32 %v1011, %v1907
        %v2036 = vmul.f32 %v1012, %v1908
        %v2037 = vmul.f32 %v1013, %v1909
        %v2038 = vpack.c.bf16 %v1914, %v1910
        %v2039 = vpack.c.bf16 %v1915, %v1911
        %v2040 = vpack.c.bf16 %v1916, %v1912
        %v2041 = vpack.c.bf16 %v1917, %v1913
        %v2042 = vpack.c.bf16 %v1922, %v1918
        %v2043 = vpack.c.bf16 %v1923, %v1919
        %v2044 = vpack.c.bf16 %v1924, %v1920
        %v2045 = vpack.c.bf16 %v1925, %v1921
        %v2046 = vpack.c.bf16 %v1930, %v1926
        %v2047 = vpack.c.bf16 %v1931, %v1927
        %v2048 = vpack.c.bf16 %v1932, %v1928
        %v2049 = vpack.c.bf16 %v1933, %v1929
        %v2050 = vpack.c.bf16 %v1938, %v1934
        %v2051 = vpack.c.bf16 %v1939, %v1935
        %v2052 = vpack.c.bf16 %v1940, %v1936
        %v2053 = vpack.c.bf16 %v1941, %v1937
        %v2054 = vpack.c.bf16 %v1946, %v1942
        %v2055 = vpack.c.bf16 %v1947, %v1943
        %v2056 = vpack.c.bf16 %v1948, %v1944
        %v2057 = vpack.c.bf16 %v1949, %v1945
        %v2058 = vpack.c.bf16 %v1954, %v1950
        %v2059 = vpack.c.bf16 %v1955, %v1951
        %v2060 = vpack.c.bf16 %v1956, %v1952
        %v2061 = vpack.c.bf16 %v1957, %v1953
        %v2062 = vpack.c.bf16 %v1962, %v1958
        %v2063 = vpack.c.bf16 %v1963, %v1959
        %v2064 = vpack.c.bf16 %v1964, %v1960
        %v2065 = vpack.c.bf16 %v1965, %v1961
        %v2066 = vpack.c.bf16 %v1970, %v1966
        %v2067 = vpack.c.bf16 %v1971, %v1967
        %v2068 = vpack.c.bf16 %v1972, %v1968
        %v2069 = vpack.c.bf16 %v1973, %v1969
        %v2070 = vpack.c.bf16 %v1978, %v1974
        %v2071 = vpack.c.bf16 %v1979, %v1975
        %v2072 = vpack.c.bf16 %v1980, %v1976
        %v2073 = vpack.c.bf16 %v1981, %v1977
        %v2074 = vpack.c.bf16 %v1986, %v1982
        %v2075 = vpack.c.bf16 %v1987, %v1983
        %v2076 = vpack.c.bf16 %v1988, %v1984
        %v2077 = vpack.c.bf16 %v1989, %v1985
        %v2078 = vpack.c.bf16 %v1994, %v1990
        %v2079 = vpack.c.bf16 %v1995, %v1991
        %v2080 = vpack.c.bf16 %v1996, %v1992
        %v2081 = vpack.c.bf16 %v1997, %v1993
        %v2082 = vpack.c.bf16 %v2002, %v1998
        %v2083 = vpack.c.bf16 %v2003, %v1999
        %v2084 = vpack.c.bf16 %v2004, %v2000
        %v2085 = vpack.c.bf16 %v2005, %v2001
        %v2086 = vpack.c.bf16 %v2010, %v2006
        %v2087 = vpack.c.bf16 %v2011, %v2007
        %v2088 = vpack.c.bf16 %v2012, %v2008
        %v2089 = vpack.c.bf16 %v2013, %v2009
        %v2090 = vpack.c.bf16 %v2018, %v2014
        %v2091 = vpack.c.bf16 %v2019, %v2015
        %v2092 = vpack.c.bf16 %v2020, %v2016
        %v2093 = vpack.c.bf16 %v2021, %v2017
        %v2094 = vpack.c.bf16 %v2026, %v2022
        %v2095 = vpack.c.bf16 %v2027, %v2023
        %v2096 = vpack.c.bf16 %v2028, %v2024
        %v2097 = vpack.c.bf16 %v2029, %v2025
        %v2098 = vpack.c.bf16 %v2034, %v2030
        %v2099 = vpack.c.bf16 %v2035, %v2031
        %v2100 = vpack.c.bf16 %v2036, %v2032
        %v2101 = vpack.c.bf16 %v2037, %v2033
        %v2102 = vld [vmem:[#allocation7] sm:$0xf]
        %v2103 = vld [vmem:[#allocation7 + $0x4] sm:$0xf]
        %v2104 = vld [vmem:[#allocation7 + $0x8] sm:$0xf]
        %v2105 = vld [vmem:[#allocation7 + $0xc] sm:$0xf]
        %v2106 = vld [vmem:[#allocation7 + $0x10] sm:$0xf]
        %v2107 = vld [vmem:[#allocation7 + $0x14] sm:$0xf]
        %v2108 = vld [vmem:[#allocation7 + $0x18] sm:$0xf]
        %v2109 = vld [vmem:[#allocation7 + $0x1c] sm:$0xf]
        %v2110 = vld [vmem:[#allocation7 + $0x20] sm:$0xf]
        %v2111 = vld [vmem:[#allocation7 + $0x24] sm:$0xf]
        %v2112 = vld [vmem:[#allocation7 + $0x28] sm:$0xf]
        %v2113 = vld [vmem:[#allocation7 + $0x2c] sm:$0xf]
        %v2114 = vld [vmem:[#allocation7 + $0x30] sm:$0xf]
        %v2115 = vld [vmem:[#allocation7 + $0x34] sm:$0xf]
        %v2116 = vld [vmem:[#allocation7 + $0x38] sm:$0xf]
        %v2117 = vld [vmem:[#allocation7 + $0x3c] sm:$0xf]
        %v2118 = vld [vmem:[#allocation7 + $0x40] sm:$0xf]
        %v2119 = vld [vmem:[#allocation7 + $0x44] sm:$0xf]
        %v2120 = vld [vmem:[#allocation7 + $0x48] sm:$0xf]
        %v2121 = vld [vmem:[#allocation7 + $0x4c] sm:$0xf]
        %v2122 = vld [vmem:[#allocation7 + $0x50] sm:$0xf]
        %v2123 = vld [vmem:[#allocation7 + $0x54] sm:$0xf]
        %v2124 = vld [vmem:[#allocation7 + $0x58] sm:$0xf]
        %v2125 = vld [vmem:[#allocation7 + $0x5c] sm:$0xf]
        %v2126 = vld [vmem:[#allocation7 + $0x60] sm:$0xf]
        %v2127 = vld [vmem:[#allocation7 + $0x64] sm:$0xf]
        %v2128 = vld [vmem:[#allocation7 + $0x68] sm:$0xf]
        %v2129 = vld [vmem:[#allocation7 + $0x6c] sm:$0xf]
        %v2130 = vld [vmem:[#allocation7 + $0x70] sm:$0xf]
        %v2131 = vld [vmem:[#allocation7 + $0x74] sm:$0xf]
        %v2132 = vld [vmem:[#allocation7 + $0x78] sm:$0xf]
        %v2133 = vld [vmem:[#allocation7 + $0x7c] sm:$0xf]
        %v2134 = vld [vmem:[#allocation7 + $0x80] sm:$0xf]
        %v2135 = vld [vmem:[#allocation7 + $0x84] sm:$0xf]
        %v2136 = vld [vmem:[#allocation7 + $0x88] sm:$0xf]
        %v2137 = vld [vmem:[#allocation7 + $0x8c] sm:$0xf]
        %v2138 = vld [vmem:[#allocation7 + $0x90] sm:$0xf]
        %v2139 = vld [vmem:[#allocation7 + $0x94] sm:$0xf]
        %v2140 = vld [vmem:[#allocation7 + $0x98] sm:$0xf]
        %v2141 = vld [vmem:[#allocation7 + $0x9c] sm:$0xf]
        %v2142 = vld [vmem:[#allocation7 + $0xa0] sm:$0xf]
        %v2143 = vld [vmem:[#allocation7 + $0xa4] sm:$0xf]
        %v2144 = vld [vmem:[#allocation7 + $0xa8] sm:$0xf]
        %v2145 = vld [vmem:[#allocation7 + $0xac] sm:$0xf]
        %v2146 = vld [vmem:[#allocation7 + $0xb0] sm:$0xf]
        %v2147 = vld [vmem:[#allocation7 + $0xb4] sm:$0xf]
        %v2148 = vld [vmem:[#allocation7 + $0xb8] sm:$0xf]
        %v2149 = vld [vmem:[#allocation7 + $0xbc] sm:$0xf]
        %v2150 = vld [vmem:[#allocation7 + $0xc0] sm:$0xf]
        %v2151 = vld [vmem:[#allocation7 + $0xc4] sm:$0xf]
        %v2152 = vld [vmem:[#allocation7 + $0xc8] sm:$0xf]
        %v2153 = vld [vmem:[#allocation7 + $0xcc] sm:$0xf]
        %v2154 = vld [vmem:[#allocation7 + $0xd0] sm:$0xf]
        %v2155 = vld [vmem:[#allocation7 + $0xd4] sm:$0xf]
        %v2156 = vld [vmem:[#allocation7 + $0xd8] sm:$0xf]
        %v2157 = vld [vmem:[#allocation7 + $0xdc] sm:$0xf]
        %v2158 = vld [vmem:[#allocation7 + $0xe0] sm:$0xf]
        %v2159 = vld [vmem:[#allocation7 + $0xe4] sm:$0xf]
        %v2160 = vld [vmem:[#allocation7 + $0xe8] sm:$0xf]
        %v2161 = vld [vmem:[#allocation7 + $0xec] sm:$0xf]
        %v2162 = vld [vmem:[#allocation7 + $0xf0] sm:$0xf]
        %v2163 = vld [vmem:[#allocation7 + $0xf4] sm:$0xf]
        %v2164 = vld [vmem:[#allocation7 + $0xf8] sm:$0xf]
        %v2165 = vld [vmem:[#allocation7 + $0xfc] sm:$0xf]
        %v2166 = vld [vmem:[%s4] sm:$0x1]
        %v2168 = vperm.slane %v2166, 0
        %v2234 = vunpack.c.l.b16 %v2102
        %v2235 = vunpack.c.l.b16 %v2103
        %v2236 = vunpack.c.l.b16 %v2104
        %v2237 = vunpack.c.l.b16 %v2105
        %v2238 = vunpack.c.l.b16 %v2106
        %v2239 = vunpack.c.l.b16 %v2107
        %v2240 = vunpack.c.l.b16 %v2108
        %v2241 = vunpack.c.l.b16 %v2109
        %v2242 = vunpack.c.l.b16 %v2110
        %v2243 = vunpack.c.l.b16 %v2111
        %v2244 = vunpack.c.l.b16 %v2112
        %v2245 = vunpack.c.l.b16 %v2113
        %v2246 = vunpack.c.l.b16 %v2114
        %v2247 = vunpack.c.l.b16 %v2115
        %v2248 = vunpack.c.l.b16 %v2116
        %v2249 = vunpack.c.l.b16 %v2117
        %v2250 = vunpack.c.l.b16 %v2118
        %v2251 = vunpack.c.l.b16 %v2119
        %v2252 = vunpack.c.l.b16 %v2120
        %v2253 = vunpack.c.l.b16 %v2121
        %v2254 = vunpack.c.l.b16 %v2122
        %v2255 = vunpack.c.l.b16 %v2123
        %v2256 = vunpack.c.l.b16 %v2124
        %v2257 = vunpack.c.l.b16 %v2125
        %v2258 = vunpack.c.l.b16 %v2126
        %v2259 = vunpack.c.l.b16 %v2127
        %v2260 = vunpack.c.l.b16 %v2128
        %v2261 = vunpack.c.l.b16 %v2129
        %v2262 = vunpack.c.l.b16 %v2130
        %v2263 = vunpack.c.l.b16 %v2131
        %v2264 = vunpack.c.l.b16 %v2132
        %v2265 = vunpack.c.l.b16 %v2133
        %v2266 = vunpack.c.l.b16 %v2134
        %v2267 = vunpack.c.l.b16 %v2135
        %v2268 = vunpack.c.l.b16 %v2136
        %v2269 = vunpack.c.l.b16 %v2137
        %v2270 = vunpack.c.l.b16 %v2138
        %v2271 = vunpack.c.l.b16 %v2139
        %v2272 = vunpack.c.l.b16 %v2140
        %v2273 = vunpack.c.l.b16 %v2141
        %v2274 = vunpack.c.l.b16 %v2142
        %v2275 = vunpack.c.l.b16 %v2143
        %v2276 = vunpack.c.l.b16 %v2144
        %v2277 = vunpack.c.l.b16 %v2145
        %v2278 = vunpack.c.l.b16 %v2146
        %v2279 = vunpack.c.l.b16 %v2147
        %v2280 = vunpack.c.l.b16 %v2148
        %v2281 = vunpack.c.l.b16 %v2149
        %v2282 = vunpack.c.l.b16 %v2150
        %v2283 = vunpack.c.l.b16 %v2151
        %v2284 = vunpack.c.l.b16 %v2152
        %v2285 = vunpack.c.l.b16 %v2153
        %v2286 = vunpack.c.l.b16 %v2154
        %v2287 = vunpack.c.l.b16 %v2155
        %v2288 = vunpack.c.l.b16 %v2156
        %v2289 = vunpack.c.l.b16 %v2157
        %v2290 = vunpack.c.l.b16 %v2158
        %v2291 = vunpack.c.l.b16 %v2159
        %v2292 = vunpack.c.l.b16 %v2160
        %v2293 = vunpack.c.l.b16 %v2161
        %v2294 = vunpack.c.l.b16 %v2162
        %v2295 = vunpack.c.l.b16 %v2163
        %v2296 = vunpack.c.l.b16 %v2164
        %v2297 = vunpack.c.l.b16 %v2165
        %v2298 = vpack.c.b16 %v2235, %v2234
        %v2299 = vpack.c.b16 %v2237, %v2236
        %v2300 = vpack.c.b16 %v2239, %v2238
        %v2301 = vpack.c.b16 %v2241, %v2240
        %v2302 = vpack.c.b16 %v2243, %v2242
        %v2303 = vpack.c.b16 %v2245, %v2244
        %v2304 = vpack.c.b16 %v2247, %v2246
        %v2305 = vpack.c.b16 %v2249, %v2248
        %v2306 = vpack.c.b16 %v2251, %v2250
        %v2307 = vpack.c.b16 %v2253, %v2252
        %v2308 = vpack.c.b16 %v2255, %v2254
        %v2309 = vpack.c.b16 %v2257, %v2256
        %v2310 = vpack.c.b16 %v2259, %v2258
        %v2311 = vpack.c.b16 %v2261, %v2260
        %v2312 = vpack.c.b16 %v2263, %v2262
        %v2313 = vpack.c.b16 %v2265, %v2264
        %v2314 = vpack.c.b16 %v2267, %v2266
        %v2315 = vpack.c.b16 %v2269, %v2268
        %v2316 = vpack.c.b16 %v2271, %v2270
        %v2317 = vpack.c.b16 %v2273, %v2272
        %v2318 = vpack.c.b16 %v2275, %v2274
        %v2319 = vpack.c.b16 %v2277, %v2276
        %v2320 = vpack.c.b16 %v2279, %v2278
        %v2321 = vpack.c.b16 %v2281, %v2280
        %v2322 = vpack.c.b16 %v2283, %v2282
        %v2323 = vpack.c.b16 %v2285, %v2284
        %v2324 = vpack.c.b16 %v2287, %v2286
        %v2325 = vpack.c.b16 %v2289, %v2288
        %v2326 = vpack.c.b16 %v2291, %v2290
        %v2327 = vpack.c.b16 %v2293, %v2292
        %v2328 = vpack.c.b16 %v2295, %v2294
        %v2329 = vpack.c.b16 %v2297, %v2296
        %2362 = vmatpush.bf16.msra.mxu0 %v2305
        %2363 = vmatpush.bf16.msra.mxu0 %v2304
        %2364 = vmatpush.bf16.msra.mxu0 %v2303
        %2365 = vmatpush.bf16.msra.mxu0 %v2302
        %2366 = vmatpush.bf16.msra.mxu0 %v2301
        %2367 = vmatpush.bf16.msra.mxu0 %v2300
        %2368 = vmatpush.bf16.msra.mxu0 %v2299
        %2369 = vmatpush.bf16.msra.mxu0 %v2298
        %2370 = vmatmul.bf16.gmra.mxu0 %v2038
        %v2371 = vpop.f32.mrf.mxu0
        %v2372 = vadd.f32 %v2168, %v2371
        %v2373 = vpop.f32.mrf.mxu0
        %v2374 = vadd.f32 %v2168, %v2373
        %2375 = vmatmul.bf16.gmra.mxu0 %v2042
        %v2376 = vpop.f32.mrf.mxu0
        %v2377 = vadd.f32 %v2168, %v2376
        %v2378 = vpop.f32.mrf.mxu0
        %v2379 = vadd.f32 %v2168, %v2378
        %2380 = vmatmul.bf16.gmra.mxu0 %v2046
        %v2381 = vpop.f32.mrf.mxu0
        %v2382 = vadd.f32 %v2168, %v2381
        %v2383 = vpop.f32.mrf.mxu0
        %v2384 = vadd.f32 %v2168, %v2383
        %2385 = vmatmul.bf16.gmra.mxu0 %v2050
        %v2386 = vpop.f32.mrf.mxu0
        %v2387 = vadd.f32 %v2168, %v2386
        %v2388 = vpop.f32.mrf.mxu0
        %v2389 = vadd.f32 %v2168, %v2388
        %2390 = vmatmul.bf16.gmra.mxu0 %v2054
        %v2391 = vpop.f32.mrf.mxu0
        %v2392 = vadd.f32 %v2168, %v2391
        %v2393 = vpop.f32.mrf.mxu0
        %v2394 = vadd.f32 %v2168, %v2393
        %2395 = vmatmul.bf16.gmra.mxu0 %v2058
        %v2396 = vpop.f32.mrf.mxu0
        %v2397 = vadd.f32 %v2168, %v2396
        %v2398 = vpop.f32.mrf.mxu0
        %v2399 = vadd.f32 %v2168, %v2398
        %2400 = vmatmul.bf16.gmra.mxu0 %v2062
        %v2401 = vpop.f32.mrf.mxu0
        %v2402 = vadd.f32 %v2168, %v2401
        %v2403 = vpop.f32.mrf.mxu0
        %v2404 = vadd.f32 %v2168, %v2403
        %2405 = vmatmul.bf16.gmra.mxu0 %v2066
        %v2406 = vpop.f32.mrf.mxu0
        %v2407 = vadd.f32 %v2168, %v2406
        %v2408 = vpop.f32.mrf.mxu0
        %v2409 = vadd.f32 %v2168, %v2408
        %2410 = vmatmul.bf16.gmra.mxu0 %v2070
        %v2411 = vpop.f32.mrf.mxu0
        %v2412 = vadd.f32 %v2168, %v2411
        %v2413 = vpop.f32.mrf.mxu0
        %v2414 = vadd.f32 %v2168, %v2413
        %2415 = vmatmul.bf16.gmra.mxu0 %v2074
        %v2416 = vpop.f32.mrf.mxu0
        %v2417 = vadd.f32 %v2168, %v2416
        %v2418 = vpop.f32.mrf.mxu0
        %v2419 = vadd.f32 %v2168, %v2418
        %2420 = vmatmul.bf16.gmra.mxu0 %v2078
        %v2421 = vpop.f32.mrf.mxu0
        %v2422 = vadd.f32 %v2168, %v2421
        %v2423 = vpop.f32.mrf.mxu0
        %v2424 = vadd.f32 %v2168, %v2423
        %2425 = vmatmul.bf16.gmra.mxu0 %v2082
        %v2426 = vpop.f32.mrf.mxu0
        %v2427 = vadd.f32 %v2168, %v2426
        %v2428 = vpop.f32.mrf.mxu0
        %v2429 = vadd.f32 %v2168, %v2428
        %2430 = vmatmul.bf16.gmra.mxu0 %v2086
        %v2431 = vpop.f32.mrf.mxu0
        %v2432 = vadd.f32 %v2168, %v2431
        %v2433 = vpop.f32.mrf.mxu0
        %v2434 = vadd.f32 %v2168, %v2433
        %2435 = vmatmul.bf16.gmra.mxu0 %v2090
        %v2436 = vpop.f32.mrf.mxu0
        %v2437 = vadd.f32 %v2168, %v2436
        %v2438 = vpop.f32.mrf.mxu0
        %v2439 = vadd.f32 %v2168, %v2438
        %2440 = vmatmul.bf16.gmra.mxu0 %v2094
        %v2441 = vpop.f32.mrf.mxu0
        %v2442 = vadd.f32 %v2168, %v2441
        %v2443 = vpop.f32.mrf.mxu0
        %v2444 = vadd.f32 %v2168, %v2443
        %2445 = vmatmul.bf16.gmra.mxu0 %v2098
        %v2446 = vpop.f32.mrf.mxu0
        %v2447 = vadd.f32 %v2168, %v2446
        %v2448 = vpop.f32.mrf.mxu0
        %v2449 = vadd.f32 %v2168, %v2448
        %2450 = vdwg.mxu0
        %2451 = vmatpush.bf16.msra.mxu0 %v2313
        %2452 = vmatpush.bf16.msra.mxu0 %v2312
        %2453 = vmatpush.bf16.msra.mxu0 %v2311
        %2454 = vmatpush.bf16.msra.mxu0 %v2310
        %2455 = vmatpush.bf16.msra.mxu0 %v2309
        %2456 = vmatpush.bf16.msra.mxu0 %v2308
        %2457 = vmatpush.bf16.msra.mxu0 %v2307
        %2458 = vmatpush.bf16.msra.mxu0 %v2306
        %2459 = vmatmul.bf16.gmra.mxu0 %v2039
        %v2460 = vpop.f32.mrf.mxu0
        %v2461 = vadd.f32 %v2372, %v2460
        %v2462 = vpop.f32.mrf.mxu0
        %v2463 = vadd.f32 %v2374, %v2462
        %2464 = vmatmul.bf16.gmra.mxu0 %v2043
        %v2465 = vpop.f32.mrf.mxu0
        %v2466 = vadd.f32 %v2377, %v2465
        %v2467 = vpop.f32.mrf.mxu0
        %v2468 = vadd.f32 %v2379, %v2467
        %2469 = vmatmul.bf16.gmra.mxu0 %v2047
        %v2470 = vpop.f32.mrf.mxu0
        %v2471 = vadd.f32 %v2382, %v2470
        %v2472 = vpop.f32.mrf.mxu0
        %v2473 = vadd.f32 %v2384, %v2472
        %2474 = vmatmul.bf16.gmra.mxu0 %v2051
        %v2475 = vpop.f32.mrf.mxu0
        %v2476 = vadd.f32 %v2387, %v2475
        %v2477 = vpop.f32.mrf.mxu0
        %v2478 = vadd.f32 %v2389, %v2477
        %2479 = vmatmul.bf16.gmra.mxu0 %v2055
        %v2480 = vpop.f32.mrf.mxu0
        %v2481 = vadd.f32 %v2392, %v2480
        %v2482 = vpop.f32.mrf.mxu0
        %v2483 = vadd.f32 %v2394, %v2482
        %2484 = vmatmul.bf16.gmra.mxu0 %v2059
        %v2485 = vpop.f32.mrf.mxu0
        %v2486 = vadd.f32 %v2397, %v2485
        %v2487 = vpop.f32.mrf.mxu0
        %v2488 = vadd.f32 %v2399, %v2487
        %2489 = vmatmul.bf16.gmra.mxu0 %v2063
        %v2490 = vpop.f32.mrf.mxu0
        %v2491 = vadd.f32 %v2402, %v2490
        %v2492 = vpop.f32.mrf.mxu0
        %v2493 = vadd.f32 %v2404, %v2492
        %2494 = vmatmul.bf16.gmra.mxu0 %v2067
        %v2495 = vpop.f32.mrf.mxu0
        %v2496 = vadd.f32 %v2407, %v2495
        %v2497 = vpop.f32.mrf.mxu0
        %v2498 = vadd.f32 %v2409, %v2497
        %2499 = vmatmul.bf16.gmra.mxu0 %v2071
        %v2500 = vpop.f32.mrf.mxu0
        %v2501 = vadd.f32 %v2412, %v2500
        %v2502 = vpop.f32.mrf.mxu0
        %v2503 = vadd.f32 %v2414, %v2502
        %2504 = vmatmul.bf16.gmra.mxu0 %v2075
        %v2505 = vpop.f32.mrf.mxu0
        %v2506 = vadd.f32 %v2417, %v2505
        %v2507 = vpop.f32.mrf.mxu0
        %v2508 = vadd.f32 %v2419, %v2507
        %2509 = vmatmul.bf16.gmra.mxu0 %v2079
        %v2510 = vpop.f32.mrf.mxu0
        %v2511 = vadd.f32 %v2422, %v2510
        %v2512 = vpop.f32.mrf.mxu0
        %v2513 = vadd.f32 %v2424, %v2512
        %2514 = vmatmul.bf16.gmra.mxu0 %v2083
        %v2515 = vpop.f32.mrf.mxu0
        %v2516 = vadd.f32 %v2427, %v2515
        %v2517 = vpop.f32.mrf.mxu0
        %v2518 = vadd.f32 %v2429, %v2517
        %2519 = vmatmul.bf16.gmra.mxu0 %v2087
        %v2520 = vpop.f32.mrf.mxu0
        %v2521 = vadd.f32 %v2432, %v2520
        %v2522 = vpop.f32.mrf.mxu0
        %v2523 = vadd.f32 %v2434, %v2522
        %2524 = vmatmul.bf16.gmra.mxu0 %v2091
        %v2525 = vpop.f32.mrf.mxu0
        %v2526 = vadd.f32 %v2437, %v2525
        %v2527 = vpop.f32.mrf.mxu0
        %v2528 = vadd.f32 %v2439, %v2527
        %2529 = vmatmul.bf16.gmra.mxu0 %v2095
        %v2530 = vpop.f32.mrf.mxu0
        %v2531 = vadd.f32 %v2442, %v2530
        %v2532 = vpop.f32.mrf.mxu0
        %v2533 = vadd.f32 %v2444, %v2532
        %2534 = vmatmul.bf16.gmra.mxu0 %v2099
        %v2535 = vpop.f32.mrf.mxu0
        %v2536 = vadd.f32 %v2447, %v2535
        %v2537 = vpop.f32.mrf.mxu0
        %v2538 = vadd.f32 %v2449, %v2537
        %2539 = vdwg.mxu0
        %2540 = vmatpush.bf16.msra.mxu0 %v2321
        %2541 = vmatpush.bf16.msra.mxu0 %v2320
        %2542 = vmatpush.bf16.msra.mxu0 %v2319
        %2543 = vmatpush.bf16.msra.mxu0 %v2318
        %2544 = vmatpush.bf16.msra.mxu0 %v2317
        %2545 = vmatpush.bf16.msra.mxu0 %v2316
        %2546 = vmatpush.bf16.msra.mxu0 %v2315
        %2547 = vmatpush.bf16.msra.mxu0 %v2314
        %2548 = vmatmul.bf16.gmra.mxu0 %v2040
        %v2549 = vpop.f32.mrf.mxu0
        %v2550 = vadd.f32 %v2461, %v2549
        %v2551 = vpop.f32.mrf.mxu0
        %v2552 = vadd.f32 %v2463, %v2551
        %2553 = vmatmul.bf16.gmra.mxu0 %v2044
        %v2554 = vpop.f32.mrf.mxu0
        %v2555 = vadd.f32 %v2466, %v2554
        %v2556 = vpop.f32.mrf.mxu0
        %v2557 = vadd.f32 %v2468, %v2556
        %2558 = vmatmul.bf16.gmra.mxu0 %v2048
        %v2559 = vpop.f32.mrf.mxu0
        %v2560 = vadd.f32 %v2471, %v2559
        %v2561 = vpop.f32.mrf.mxu0
        %v2562 = vadd.f32 %v2473, %v2561
        %2563 = vmatmul.bf16.gmra.mxu0 %v2052
        %v2564 = vpop.f32.mrf.mxu0
        %v2565 = vadd.f32 %v2476, %v2564
        %v2566 = vpop.f32.mrf.mxu0
        %v2567 = vadd.f32 %v2478, %v2566
        %2568 = vmatmul.bf16.gmra.mxu0 %v2056
        %v2569 = vpop.f32.mrf.mxu0
        %v2570 = vadd.f32 %v2481, %v2569
        %v2571 = vpop.f32.mrf.mxu0
        %v2572 = vadd.f32 %v2483, %v2571
        %2573 = vmatmul.bf16.gmra.mxu0 %v2060
        %v2574 = vpop.f32.mrf.mxu0
        %v2575 = vadd.f32 %v2486, %v2574
        %v2576 = vpop.f32.mrf.mxu0
        %v2577 = vadd.f32 %v2488, %v2576
        %2578 = vmatmul.bf16.gmra.mxu0 %v2064
        %v2579 = vpop.f32.mrf.mxu0
        %v2580 = vadd.f32 %v2491, %v2579
        %v2581 = vpop.f32.mrf.mxu0
        %v2582 = vadd.f32 %v2493, %v2581
        %2583 = vmatmul.bf16.gmra.mxu0 %v2068
        %v2584 = vpop.f32.mrf.mxu0
        %v2585 = vadd.f32 %v2496, %v2584
        %v2586 = vpop.f32.mrf.mxu0
        %v2587 = vadd.f32 %v2498, %v2586
        %2588 = vmatmul.bf16.gmra.mxu0 %v2072
        %v2589 = vpop.f32.mrf.mxu0
        %v2590 = vadd.f32 %v2501, %v2589
        %v2591 = vpop.f32.mrf.mxu0
        %v2592 = vadd.f32 %v2503, %v2591
        %2593 = vmatmul.bf16.gmra.mxu0 %v2076
        %v2594 = vpop.f32.mrf.mxu0
        %v2595 = vadd.f32 %v2506, %v2594
        %v2596 = vpop.f32.mrf.mxu0
        %v2597 = vadd.f32 %v2508, %v2596
        %2598 = vmatmul.bf16.gmra.mxu0 %v2080
        %v2599 = vpop.f32.mrf.mxu0
        %v2600 = vadd.f32 %v2511, %v2599
        %v2601 = vpop.f32.mrf.mxu0
        %v2602 = vadd.f32 %v2513, %v2601
        %2603 = vmatmul.bf16.gmra.mxu0 %v2084
        %v2604 = vpop.f32.mrf.mxu0
        %v2605 = vadd.f32 %v2516, %v2604
        %v2606 = vpop.f32.mrf.mxu0
        %v2607 = vadd.f32 %v2518, %v2606
        %2608 = vmatmul.bf16.gmra.mxu0 %v2088
        %v2609 = vpop.f32.mrf.mxu0
        %v2610 = vadd.f32 %v2521, %v2609
        %v2611 = vpop.f32.mrf.mxu0
        %v2612 = vadd.f32 %v2523, %v2611
        %2613 = vmatmul.bf16.gmra.mxu0 %v2092
        %v2614 = vpop.f32.mrf.mxu0
        %v2615 = vadd.f32 %v2526, %v2614
        %v2616 = vpop.f32.mrf.mxu0
        %v2617 = vadd.f32 %v2528, %v2616
        %2618 = vmatmul.bf16.gmra.mxu0 %v2096
        %v2619 = vpop.f32.mrf.mxu0
        %v2620 = vadd.f32 %v2531, %v2619
        %v2621 = vpop.f32.mrf.mxu0
        %v2622 = vadd.f32 %v2533, %v2621
        %2623 = vmatmul.bf16.gmra.mxu0 %v2100
        %v2624 = vpop.f32.mrf.mxu0
        %v2625 = vadd.f32 %v2536, %v2624
        %v2626 = vpop.f32.mrf.mxu0
        %v2627 = vadd.f32 %v2538, %v2626
        %2628 = vdwg.mxu0
        %2629 = vmatpush.bf16.msra.mxu0 %v2329
        %2630 = vmatpush.bf16.msra.mxu0 %v2328
        %2631 = vmatpush.bf16.msra.mxu0 %v2327
        %2632 = vmatpush.bf16.msra.mxu0 %v2326
        %2633 = vmatpush.bf16.msra.mxu0 %v2325
        %2634 = vmatpush.bf16.msra.mxu0 %v2324
        %2635 = vmatpush.bf16.msra.mxu0 %v2323
        %2636 = vmatpush.bf16.msra.mxu0 %v2322
        %2637 = vmatmul.bf16.gmra.mxu0 %v2041
        %v2638 = vpop.f32.mrf.mxu0
        %v2639 = vadd.f32 %v2550, %v2638
        %v2640 = vpop.f32.mrf.mxu0
        %v2641 = vadd.f32 %v2552, %v2640
        %2642 = vmatmul.bf16.gmra.mxu0 %v2045
        %v2643 = vpop.f32.mrf.mxu0
        %v2644 = vadd.f32 %v2555, %v2643
        %v2645 = vpop.f32.mrf.mxu0
        %v2646 = vadd.f32 %v2557, %v2645
        %2647 = vmatmul.bf16.gmra.mxu0 %v2049
        %v2648 = vpop.f32.mrf.mxu0
        %v2649 = vadd.f32 %v2560, %v2648
        %v2650 = vpop.f32.mrf.mxu0
        %v2651 = vadd.f32 %v2562, %v2650
        %2652 = vmatmul.bf16.gmra.mxu0 %v2053
        %v2653 = vpop.f32.mrf.mxu0
        %v2654 = vadd.f32 %v2565, %v2653
        %v2655 = vpop.f32.mrf.mxu0
        %v2656 = vadd.f32 %v2567, %v2655
        %2657 = vmatmul.bf16.gmra.mxu0 %v2057
        %v2658 = vpop.f32.mrf.mxu0
        %v2659 = vadd.f32 %v2570, %v2658
        %v2660 = vpop.f32.mrf.mxu0
        %v2661 = vadd.f32 %v2572, %v2660
        %2662 = vmatmul.bf16.gmra.mxu0 %v2061
        %v2663 = vpop.f32.mrf.mxu0
        %v2664 = vadd.f32 %v2575, %v2663
        %v2665 = vpop.f32.mrf.mxu0
        %v2666 = vadd.f32 %v2577, %v2665
        %2667 = vmatmul.bf16.gmra.mxu0 %v2065
        %v2668 = vpop.f32.mrf.mxu0
        %v2669 = vadd.f32 %v2580, %v2668
        %v2670 = vpop.f32.mrf.mxu0
        %v2671 = vadd.f32 %v2582, %v2670
        %2672 = vmatmul.bf16.gmra.mxu0 %v2069
        %v2673 = vpop.f32.mrf.mxu0
        %v2674 = vadd.f32 %v2585, %v2673
        %v2675 = vpop.f32.mrf.mxu0
        %v2676 = vadd.f32 %v2587, %v2675
        %2677 = vmatmul.bf16.gmra.mxu0 %v2073
        %v2678 = vpop.f32.mrf.mxu0
        %v2679 = vadd.f32 %v2590, %v2678
        %v2680 = vpop.f32.mrf.mxu0
        %v2681 = vadd.f32 %v2592, %v2680
        %2682 = vmatmul.bf16.gmra.mxu0 %v2077
        %v2683 = vpop.f32.mrf.mxu0
        %v2684 = vadd.f32 %v2595, %v2683
        %v2685 = vpop.f32.mrf.mxu0
        %v2686 = vadd.f32 %v2597, %v2685
        %2687 = vmatmul.bf16.gmra.mxu0 %v2081
        %v2688 = vpop.f32.mrf.mxu0
        %v2689 = vadd.f32 %v2600, %v2688
        %v2690 = vpop.f32.mrf.mxu0
        %v2691 = vadd.f32 %v2602, %v2690
        %2692 = vmatmul.bf16.gmra.mxu0 %v2085
        %v2693 = vpop.f32.mrf.mxu0
        %v2694 = vadd.f32 %v2605, %v2693
        %v2695 = vpop.f32.mrf.mxu0
        %v2696 = vadd.f32 %v2607, %v2695
        %2697 = vmatmul.bf16.gmra.mxu0 %v2089
        %v2698 = vpop.f32.mrf.mxu0
        %v2699 = vadd.f32 %v2610, %v2698
        %v2700 = vpop.f32.mrf.mxu0
        %v2701 = vadd.f32 %v2612, %v2700
        %2702 = vmatmul.bf16.gmra.mxu0 %v2093
        %v2703 = vpop.f32.mrf.mxu0
        %v2704 = vadd.f32 %v2615, %v2703
        %v2705 = vpop.f32.mrf.mxu0
        %v2706 = vadd.f32 %v2617, %v2705
        %2707 = vmatmul.bf16.gmra.mxu0 %v2097
        %v2708 = vpop.f32.mrf.mxu0
        %v2709 = vadd.f32 %v2620, %v2708
        %v2710 = vpop.f32.mrf.mxu0
        %v2711 = vadd.f32 %v2622, %v2710
        %2712 = vmatmul.bf16.gmra.mxu0 %v2101
        %v2713 = vpop.f32.mrf.mxu0
        %v2714 = vadd.f32 %v2625, %v2713
        %v2715 = vpop.f32.mrf.mxu0
        %v2716 = vadd.f32 %v2627, %v2715
        %2717 = vdwg.mxu0
        %2718 = vst [vmem:[%s277] sm:$0xff] %v2639
        %2719 = vst [vmem:[%s277 + $0x8] sm:$0xff] %v2641
        %2720 = vst [vmem:[%s277 + $0x10] sm:$0xff] %v2644
        %2721 = vst [vmem:[%s277 + $0x18] sm:$0xff] %v2646
        %2722 = vst [vmem:[%s277 + $0x20] sm:$0xff] %v2649
        %2723 = vst [vmem:[%s277 + $0x28] sm:$0xff] %v2651
        %2724 = vst [vmem:[%s277 + $0x30] sm:$0xff] %v2654
        %2725 = vst [vmem:[%s277 + $0x38] sm:$0xff] %v2656
        %2726 = vst [vmem:[%s277 + $0x40] sm:$0xff] %v2659
        %2727 = vst [vmem:[%s277 + $0x48] sm:$0xff] %v2661
        %2728 = vst [vmem:[%s277 + $0x50] sm:$0xff] %v2664
        %2729 = vst [vmem:[%s277 + $0x58] sm:$0xff] %v2666
        %2730 = vst [vmem:[%s277 + $0x60] sm:$0xff] %v2669
        %2731 = vst [vmem:[%s277 + $0x68] sm:$0xff] %v2671
        %2732 = vst [vmem:[%s277 + $0x70] sm:$0xff] %v2674
        %2733 = vst [vmem:[%s277 + $0x78] sm:$0xff] %v2676
        %2734 = vst [vmem:[%s277 + $0x80] sm:$0xff] %v2679
        %2735 = vst [vmem:[%s277 + $0x88] sm:$0xff] %v2681
        %2736 = vst [vmem:[%s277 + $0x90] sm:$0xff] %v2684
        %2737 = vst [vmem:[%s277 + $0x98] sm:$0xff] %v2686
        %2738 = vst [vmem:[%s277 + $0xa0] sm:$0xff] %v2689
        %2739 = vst [vmem:[%s277 + $0xa8] sm:$0xff] %v2691
        %2740 = vst [vmem:[%s277 + $0xb0] sm:$0xff] %v2694
        %2741 = vst [vmem:[%s277 + $0xb8] sm:$0xff] %v2696
        %2742 = vst [vmem:[%s277 + $0xc0] sm:$0xff] %v2699
        %2743 = vst [vmem:[%s277 + $0xc8] sm:$0xff] %v2701
        %2744 = vst [vmem:[%s277 + $0xd0] sm:$0xff] %v2704
        %2745 = vst [vmem:[%s277 + $0xd8] sm:$0xff] %v2706
        %2746 = vst [vmem:[%s277 + $0xe0] sm:$0xff] %v2709
        %2747 = vst [vmem:[%s277 + $0xe8] sm:$0xff] %v2711
        %2748 = vst [vmem:[%s277 + $0xf0] sm:$0xff] %v2714
        %2749 = vst [vmem:[%s277 + $0xf8] sm:$0xff] %v2716
        %s2750 = sand.u32 %s141, 1
        %s2751 = scalar_lea.sflag [#allocation4], %s2750
        %s2752 = sand.u32 %s141, 1
        %s2753 = smul.addr %s2752, 256
        %s2754 = scalar_lea.vmem [#allocation8], %s2753
        // Predicated region
        $region53: #{feed_forward.1} parent=39 // pred_check
          %p2755 = pneg %p151
        $region54: #{feed_forward.1} parent=39 // pred_check_branch
          %2757 = sbr.rel (%p2755) target = $region56
        $region55: #{feed_forward.1} parent=39 // pred_region
          %s2758 = smul.u32 32, %s23
          %2760 = vsyncadd %s2751, 0
          %s2761 = smul.addr %s2758, 8
          %s2762 = scalar_lea.hbm %s5, %s2761
          %s2763 = sshll.u32 %s2754, 4
          %s2764 = int_to_ptr.vmem [resolvable:$true] %s2763
          %s2765 = sshll.u32 %s2762, 4
          %s2766 = int_to_ptr.hbm [resolvable:$true] %s2765
          %2771 = dma.vmem_to_hbm [thread:$0]  %s2764, 4096, %s2766, %s2751, 128, 128, 8
        $region56: #{feed_forward.1} parent=39 // pred_fallthru
          _
      $region40: #{feed_forward.1} parent=5 // pred_fallthru
        _
      %p2772 = scmp.le.s32.totalorder 2, %s18
      // Predicated region
      $region57: #{feed_forward.1} parent=5 // pred_check
        %p2773 = pneg %p2772
      $region58: #{feed_forward.1} parent=5 // pred_check_branch
        %2775 = sbr.rel (%p2773) target = $region60
      $region59: #{feed_forward.1} parent=5 // pred_region
        %s2776 = ssub.s32 %s18, 2
        // Predicated region
        $region61: #{feed_forward.1} parent=59 // pred_check
          %p2777 = pneg %p157
        $region62: #{feed_forward.1} parent=59 // pred_check_branch
          %2779 = sbr.rel (%p2777) target = $region64
        $region63: #{feed_forward.1} parent=59 // pred_region
          %s2780 = sand.u32 %s142, 1
          %s2781 = scalar_lea.sflag [#allocation4], %s2780
          %s2782 = sand.u32 %s142, 1
          %s2783 = smul.addr %s2782, 256
          %s2784 = scalar_lea.vmem [#allocation8], %s2783
          %2786 = dma.done %s2781, 4096
        $region64: #{feed_forward.1} parent=59 // pred_fallthru
          _
      $region60: #{feed_forward.1} parent=5 // pred_fallthru
        _
    $region6: #{feed_forward.1} parent=1 // loop_footer
      %s22 = sadd.s32 1, %s18
    $region7: #{feed_forward.1} parent=1 // loop_footer_branch
      %17 = sbr.rel target = $region3
    $region8: #{feed_forward.1} parent=1 // loop_exit
      _
    %2787 = vsyncpa [#allocation3], 1
    %s2788 = scalar_lea.sflag [#allocation3], 1
    %2789 = vsyncpa %s2788, 1
    %2790 = vsyncpa [#allocation6], 1
    %2791 = vsyncpa [#allocation4], 1
    %s2792 = scalar_lea.sflag [#allocation4], 1
    %2793 = vsyncpa %s2792, 1

</llo_original>
